<compile_context>
chip_gen: v7x
topology: tpu7x:2x2x1
jax: 0.10.0
libtpu: 0.0.40
codegen_flags: <defaults>
</compile_context>

<pallas_src>
import jax
import jax.numpy as jnp
from jax.experimental import pallas as pl
from jax.experimental.pallas import tpu as pltpu

BN_EPS = 1e-5
LN_EPS = 1e-5


def _vmem_spec():
    # whole-array operand resident in VMEM (weights, packed-head params, x)
    return pl.BlockSpec(memory_space=pltpu.MemorySpace.VMEM)


# ---------------------------------------------------------------------------
# Fused kernel: staged grid over (layer-or-head, row tile)
# ---------------------------------------------------------------------------
def make_fused_kernel(num_layers, use_residual, hidden, hh, head_w, tm):
    L = num_layers

    def kernel(s_ref, x_ref, w01_ref, b_ref,
               wh1_ref, bh1_ref, gh1_ref, beth1_ref, wp2_ref, bp2_ref,
               o_ref, h_a, h_b, t0s, hw1s):
        l = pl.program_id(0)                      # stage: 0..L-1 convs, L = head
        t = pl.program_id(1)                      # node/row tile
        row0 = pl.multiple_of(t * tm, tm)

        # ---- prime the ping-pong state with the (zero-padded) input features
        @pl.when(jnp.logical_and(l == 0, t == 0))
        def _():
            h_a[...] = x_ref[...]                 # slot 0 <- x padded to [N, H]

        # ============= ChebConv(K=2) + BN(eval, folded) + ReLU + residual ====
        # Per-stage feature matmul over ALL rows, done once per stage (t == 0):
        #   [T0 | h@W1] = h_prev @ [W0 | W1]     (single fused MXU launch)
        @pl.when(jnp.logical_and(l < L, t == 0))
        def _():
            parity = l % 2
            hprev = jnp.where(parity == 0, h_a[...], h_b[...])        # [N, H] f32
            w01 = w01_ref[l]                                          # [H, 2H] bf16
            z01 = jnp.dot(hprev.astype(jnp.bfloat16), w01,
                          preferred_element_type=jnp.float32)         # [N, 2H]
            t0s[...] = z01[:, :hidden] + b_ref[l]                     # bias/BN shift
            hw1s[...] = z01[:, hidden:].astype(jnp.bfloat16)          # feeds S matmul

        # Per-row-tile S matmul + epilogue (S strip streamed / double-buffered).
        @pl.when(l < L)
        def _():
            parity = l % 2
            t1 = jnp.dot(s_ref[...], hw1s[...],
                         preferred_element_type=jnp.float32)          # [TM, H]
            y = jnp.maximum(t0s[pl.ds(row0, tm), :] + t1, 0.0)        # BN+ReLU
            if use_residual:
                hprev_t = jnp.where(parity == 0,
                                    h_a[pl.ds(row0, tm), :],
                                    h_b[pl.ds(row0, tm), :])
                y = jnp.where(l > 0, y + hprev_t, y)                  # no res on layer 0

            # write to the opposite ping-pong buffer
            @pl.when(parity == 1)
            def _():
                h_a[pl.ds(row0, tm), :] = y

            @pl.when(parity == 0)
            def _():
                h_b[pl.ds(row0, tm), :] = y

        # ================= fused pos / radius head (lane-dense) ==============
        @pl.when(l == L)
        def _():
            h_final = h_b if (L % 2 == 1) else h_a       # static slot choice
            h_t = h_final[pl.ds(row0, tm), :]                         # [TM, H]

            # packed first-stage linear: lanes [0:H)=pos, [H:H+hh)=radius
            z = jnp.dot(h_t.astype(jnp.bfloat16), wh1_ref[...],
                        preferred_element_type=jnp.float32) + bh1_ref[...]
            lane = jax.lax.broadcasted_iota(jnp.int32, z.shape, 1)
            in_p = lane < hidden
            in_r = jnp.logical_and(lane >= hidden, lane < hidden + hh)

            # masked per-branch LayerNorm (gamma/beta are 0 on padded lanes)
            mean_p = jnp.sum(jnp.where(in_p, z, 0.0), -1, keepdims=True) * (1.0 / hidden)
            mean_r = jnp.sum(jnp.where(in_r, z, 0.0), -1, keepdims=True) * (1.0 / hh)
            d = z - jnp.where(in_p, mean_p, mean_r)
            var_p = jnp.sum(jnp.where(in_p, d * d, 0.0), -1, keepdims=True) * (1.0 / hidden)
            var_r = jnp.sum(jnp.where(in_r, d * d, 0.0), -1, keepdims=True) * (1.0 / hh)
            inv = jnp.where(in_p, jax.lax.rsqrt(var_p + LN_EPS),
                            jax.lax.rsqrt(var_r + LN_EPS))
            zn = jnp.maximum(d * inv * gh1_ref[...] + beth1_ref[...], 0.0)

            # packed second stage: cols 0:2 = pos, col 2 = radius pre-activation
            y2 = jnp.dot(zn.astype(jnp.bfloat16), wp2_ref[...],
                         preferred_element_type=jnp.float32) + bp2_ref[...]
            lane2 = jax.lax.broadcasted_iota(jnp.int32, y2.shape, 1)
            pos = jnp.where(lane2 < 2, y2, 0.0)
            rad = jax.nn.sigmoid(
                jnp.sum(jnp.where(lane2 == 2, y2, 0.0), -1, keepdims=True))
            inv_norm = jax.lax.rsqrt(jnp.sum(pos * pos, -1, keepdims=True) + 1e-12)
            o_ref[...] = pos * (rad * inv_norm)     # lane-dense [TM, head_w] store

    return kernel


# ---------------------------------------------------------------------------
# Host-side glue: graph operator, parameter init (BN fold + W0|W1 + head pack)
# ---------------------------------------------------------------------------
def build_scaled_laplacian(edge_index, N):
    """Dense Lhat = -D^{-1/2} A D^{-1/2} (PyG ChebConv, sym norm, lambda_max=2)."""
    src, dst = edge_index[0], edge_index[1]
    w = jnp.ones(src.shape, jnp.float32)
    deg = jnp.zeros((N,), jnp.float32).at[src].add(w)
    dinv = jnp.where(deg > 0, jax.lax.rsqrt(jnp.maximum(deg, 1e-12)), 0.0)
    wn = dinv[src] * w * dinv[dst]
    S = jnp.zeros((N, N), jnp.float32).at[dst, src].add(-wn)
    return S


def xavier(key, fan_in, fan_out):
    limit = (6.0 / (fan_in + fan_out)) ** 0.5
    return jax.random.uniform(key, (fan_in, fan_out), jnp.float32, -limit, limit)


def init_params(key, input_dim, hidden, num_layers=3):
    assert input_dim <= hidden, "input features are zero-padded up to hidden"
    hh = hidden // 2
    head_w = max(128, ((hidden + hh + 127) // 128) * 128)   # lane-dense head width
    keys = jax.random.split(key, 2 * num_layers + 4)

    # BatchNorm1d eval fold: scale = gamma/sqrt(var+eps), shift = beta - mean*scale
    # (running_mean=0, running_var=1, gamma=1, beta=0 here)
    bn_scale = 1.0 / float(jnp.sqrt(1.0 + BN_EPS))
    bn_shift = 0.0

    # Stacked fused [W0 | W1] per layer (layer-0 input rows zero-padded to H).
    w01_list, b_list = [], []
    in_dim = input_dim
    for i in range(num_layers):
        w0 = xavier(keys[2 * i], in_dim, hidden) * bn_scale
        w1 = xavier(keys[2 * i + 1], in_dim, hidden) * bn_scale
        w01 = (jnp.zeros((hidden, 2 * hidden), jnp.float32)
               .at[:in_dim, :hidden].set(w0)
               .at[:in_dim, hidden:].set(w1))
        # conv bias = 0; general fold would be (bias - mean)*scale + beta
        b = jnp.full((1, hidden), (0.0 - 0.0) * bn_scale + bn_shift, jnp.float32)
        w01_list.append(w01)
        b_list.append(b)
        in_dim = hidden
    W01 = jnp.stack(w01_list).astype(jnp.bfloat16)           # [L, H, 2H]
    B = jnp.stack(b_list)                                     # [L, 1, H]

    k = 2 * num_layers
    # position MLP: Linear(H,H) -> LN -> ReLU -> Linear(H,2)
    wp1 = xavier(keys[k + 0], hidden, hidden)
    bp1 = jnp.zeros((hidden,), jnp.float32)
    gp, betap = jnp.ones((hidden,), jnp.float32), jnp.zeros((hidden,), jnp.float32)
    wp2 = xavier(keys[k + 1], hidden, 2)
    bp2 = jnp.zeros((2,), jnp.float32)
    # radius MLP: Linear(H,H/2) -> LN -> ReLU -> Linear(H/2,1) -> sigmoid
    wr1 = xavier(keys[k + 2], hidden, hh)
    br1 = jnp.zeros((hh,), jnp.float32)
    gr, betar = jnp.ones((hh,), jnp.float32), jnp.zeros((hh,), jnp.float32)
    wr2 = xavier(keys[k + 3], hh, 1)
    br2 = 0.0

    # pack both first-stage linears column-wise into one lane-dense [H, 128] matmul
    WH1 = (jnp.zeros((hidden, head_w), jnp.float32)
           .at[:, :hidden].set(wp1).at[:, hidden:hidden + hh].set(wr1))
    BH1 = (jnp.zeros((1, head_w), jnp.float32)
           .at[0, :hidden].set(bp1).at[0, hidden:hidden + hh].set(br1))
    GH1 = (jnp.zeros((1, head_w), jnp.float32)
           .at[0, :hidden].set(gp).at[0, hidden:hidden + hh].set(gr))
    BETAH1 = (jnp.zeros((1, head_w), jnp.float32)
              .at[0, :hidden].set(betap).at[0, hidden:hidden + hh].set(betar))
    # pos second stage in cols 0:2; radius second stage folded into col 2
    WP2 = (jnp.zeros((head_w, head_w), jnp.float32)
           .at[:hidden, :2].set(wp2)
           .at[hidden:hidden + hh, 2].set(wr2[:, 0]))
    BP2 = (jnp.zeros((1, head_w), jnp.float32)
           .at[0, :2].set(bp2).at[0, 2].set(br2))

    head = (WH1.astype(jnp.bfloat16), BH1, GH1, BETAH1,
            WP2.astype(jnp.bfloat16), BP2)
    return {"w01": W01, "b": B, "head": head, "hidden": hidden, "hh": hh,
            "head_w": head_w, "num_layers": num_layers}


def gnn_chebconv_forward(x, edge_index, params, use_residual=True, tm=32):
    N, F = x.shape
    H, hh = params["hidden"], params["hh"]
    head_w, L = params["head_w"], params["num_layers"]
    TM = max(8, tm)
    n_tiles = pl.cdiv(N, TM)
    N_pad = n_tiles * TM

    # dense scaled Laplacian, zero-padded (padded rows/cols are zero so they
    # never contaminate real rows); bf16 halves strip DMA bytes
    # TODO(synk): quantize S to int8 (v5e/v6e) / fp8 (v7x) or go CSR SpMM at scale.
    S = build_scaled_laplacian(edge_index, N)
    S_pad = jnp.zeros((N_pad, N_pad), jnp.float32).at[:N, :N].set(S).astype(jnp.bfloat16)
    # input features zero-padded to [N_pad, H] so every layer shares one weight stack
    x_pad = jnp.zeros((N_pad, H), jnp.float32).at[:N, :F].set(x)

    kernel = make_fused_kernel(L, use_residual, H, hh, head_w, TM)

    flops = (L * (4 * N_pad * H * H + 2 * N_pad * N_pad * H)
             + 2 * N_pad * H * head_w + 2 * N_pad * head_w * head_w)
    bytes_accessed = ((L + 1) * N_pad * N_pad * 2          # S strips (bf16) per stage
                      + N_pad * H * 4                      # x
                      + L * H * 2 * H * 2                  # conv weights
                      + head_w * head_w * 2 + 6 * head_w * 4
                      + N_pad * head_w * 4)                # output

    out = pl.pallas_call(
        kernel,
        out_shape=jax.ShapeDtypeStruct((N_pad, head_w), jnp.float32),
        grid_spec=pltpu.PrefetchScalarGridSpec(
            num_scalar_prefetch=0,
            grid=(L + 1, n_tiles),                         # (stage, row tile)
            in_specs=[pl.BlockSpec((TM, N_pad), lambda l, t: (t, 0))]  # S strips
                     + [_vmem_spec() for _ in range(9)],               # x + weights
            out_specs=pl.BlockSpec((TM, head_w), lambda l, t: (t, 0)),
            scratch_shapes=[
                pltpu.VMEM((N_pad, H), jnp.float32),       # h ping
                pltpu.VMEM((N_pad, H), jnp.float32),       # h pong
                pltpu.VMEM((N_pad, H), jnp.float32),       # T0 = h@W0 + b (per stage)
                pltpu.VMEM((N_pad, H), jnp.bfloat16),      # h@W1 (per stage)
            ],
        ),
        compiler_params=pltpu.CompilerParams(
            # stage axis is a true dependency chain; row-tile axis also cannot be
            # megacore-parallel because layer l+1 needs ALL row tiles of layer l.
            # TODO(synk): batch multiple graphs on a leading "parallel" axis for v7x.
            dimension_semantics=("arbitrary", "arbitrary"),
            vmem_limit_bytes=32 * 1024 * 1024,             # v5e default is only 16 MiB
        ),
        cost_estimate=pl.CostEstimate(flops=flops, transcendentals=6 * N_pad,
                                      bytes_accessed=bytes_accessed),
    )(S_pad, x_pad, params["w01"], params["b"], *params["head"])
    return out[:N, :2]   # slice the lane-dense padded output outside the kernel


if __name__ == "__main__":
    N = 64          # number of graph nodes (2 row tiles of 32)
    INPUT_DIM = 8   # node feature dimension
    HIDDEN = 32     # hidden_channels
    NUM_LAYERS = 3

    key = jax.random.PRNGKey(0)
    kx, kp = jax.random.split(key)

    # node features [N, F]
    x = jax.random.normal(kx, (N, INPUT_DIM), jnp.float32)

    # bidirectional ring graph edge_index [2, 2N]
    idx = jnp.arange(N, dtype=jnp.int32)
    src = jnp.concatenate([idx, idx])
    dst = jnp.concatenate([(idx + 1) % N, (idx - 1) % N])
    edge_index = jnp.stack([src, dst])

    params = init_params(kp, INPUT_DIM, HIDDEN, NUM_LAYERS)

    coords = gnn_chebconv_forward(x, edge_index, params)
    coords = jax.block_until_ready(coords)

    assert coords.shape == (N, 2)
    assert bool(jnp.all(jnp.isfinite(coords)))
    print("KERNEL_OK")
</pallas_src>

<mosaic_0001>
module attributes {stable_mosaic.version = 11 : i64} {
  func.func @kernel(%arg0: i32, %arg1: i32, %arg2: memref<32x64xbf16, #tpu.memory_space<vmem>>, %arg3: memref<64x32xf32, #tpu.memory_space<vmem>>, %arg4: memref<3x32x64xbf16, #tpu.memory_space<vmem>>, %arg5: memref<3x1x32xf32, #tpu.memory_space<vmem>>, %arg6: memref<32x128xbf16, #tpu.memory_space<vmem>>, %arg7: memref<1x128xf32, #tpu.memory_space<vmem>>, %arg8: memref<1x128xf32, #tpu.memory_space<vmem>>, %arg9: memref<1x128xf32, #tpu.memory_space<vmem>>, %arg10: memref<128x128xbf16, #tpu.memory_space<vmem>>, %arg11: memref<1x128xf32, #tpu.memory_space<vmem>>, %arg12: memref<32x128xf32, #tpu.memory_space<vmem>>, %arg13: memref<64x32xf32, #tpu.memory_space<vmem>>, %arg14: memref<64x32xf32, #tpu.memory_space<vmem>>, %arg15: memref<64x32xf32, #tpu.memory_space<vmem>>, %arg16: memref<64x32xbf16, #tpu.memory_space<vmem>>) attributes {dimension_semantics = [#tpu.dimension_semantics<arbitrary>, #tpu.dimension_semantics<arbitrary>], iteration_bounds = array<i64: 4, 2>, scalar_prefetch = 0 : i64, scratch_operands = 4 : i64, tpu.core_type = #tpu.core_type<tc>, window_params = [{transform_indices = @transform_0, window_bounds = array<i64: 32, 64>}, {pipeline_mode = #tpu.pipeline_mode<synchronous>, transform_indices = @transform_1, window_bounds = array<i64: 64, 32>}, {pipeline_mode = #tpu.pipeline_mode<synchronous>, transform_indices = @transform_2, window_bounds = array<i64: 3, 32, 64>}, {pipeline_mode = #tpu.pipeline_mode<synchronous>, transform_indices = @transform_3, window_bounds = array<i64: 3, 1, 32>}, {pipeline_mode = #tpu.pipeline_mode<synchronous>, transform_indices = @transform_4, window_bounds = array<i64: 32, 128>}, {pipeline_mode = #tpu.pipeline_mode<synchronous>, transform_indices = @transform_5, window_bounds = array<i64: 1, 128>}, {pipeline_mode = #tpu.pipeline_mode<synchronous>, transform_indices = @transform_6, window_bounds = array<i64: 1, 128>}, {pipeline_mode = #tpu.pipeline_mode<synchronous>, transform_indices = @transform_7, window_bounds = array<i64: 1, 128>}, {pipeline_mode = #tpu.pipeline_mode<synchronous>, transform_indices = @transform_8, window_bounds = array<i64: 128, 128>}, {pipeline_mode = #tpu.pipeline_mode<synchronous>, transform_indices = @transform_9, window_bounds = array<i64: 1, 128>}, {transform_indices = @transform_10, window_bounds = array<i64: 32, 128>}]} {
    %c32_i32 = arith.constant 32 : i32
    %0 = arith.muli %arg1, %c32_i32 : i32
    %1 = tpu.assume_multiple %0, 32 : i32
    %c0_i32 = arith.constant 0 : i32
    %2 = arith.cmpi eq, %arg0, %c0_i32 : i32
    %c0_i32_0 = arith.constant 0 : i32
    %3 = arith.cmpi eq, %arg1, %c0_i32_0 : i32
    %4 = arith.andi %2, %3 : i1
    %5 = arith.extui %4 : i1 to i32
    %c0_i32_1 = arith.constant 0 : i32
    %6 = arith.cmpi ne, %5, %c0_i32_1 : i32
    scf.if %6 {
      %c0 = arith.constant 0 : index
      %c0_8 = arith.constant 0 : index
      %18 = vector.load %arg3[%c0, %c0_8] : memref<64x32xf32, #tpu.memory_space<vmem>>, vector<64x32xf32>
      %c0_9 = arith.constant 0 : index
      %c0_10 = arith.constant 0 : index
      %19 = vector.load %arg13[%c0_9, %c0_10] : memref<64x32xf32, #tpu.memory_space<vmem>>, vector<64x32xf32>
      tpu.vector_store %arg13[%c0_9, %c0_10], %18 {strides = array<i32>} : memref<64x32xf32, #tpu.memory_space<vmem>>, vector<64x32xf32>,
    } else {
    }
    %c3_i32 = arith.constant 3 : i32
    %7 = arith.cmpi slt, %arg0, %c3_i32 : i32
    %c0_i32_2 = arith.constant 0 : i32
    %8 = arith.cmpi eq, %arg1, %c0_i32_2 : i32
    %9 = arith.andi %7, %8 : i1
    %10 = arith.extui %9 : i1 to i32
    %c0_i32_3 = arith.constant 0 : i32
    %11 = arith.cmpi ne, %10, %c0_i32_3 : i32
    scf.if %11 {
      %c2_i32 = arith.constant 2 : i32
      %c0_i32_8 = arith.constant 0 : i32
      %18 = arith.cmpi eq, %c2_i32, %c0_i32_8 : i32
      %c1_i32 = arith.constant 1 : i32
      %19 = arith.select %18, %c1_i32, %c2_i32 : i32
      %20 = arith.remsi %arg0, %19 : i32
      %c0_i32_9 = arith.constant 0 : i32
      %21 = arith.cmpi ne, %20, %c0_i32_9 : i32
      %c0_i32_10 = arith.constant 0 : i32
      %22 = arith.cmpi slt, %20, %c0_i32_10 : i32
      %c0_i32_11 = arith.constant 0 : i32
      %23 = arith.cmpi slt, %19, %c0_i32_11 : i32
      %24 = arith.xori %22, %23 : i1
      %25 = arith.andi %24, %21 : i1
      %26 = arith.addi %20, %19 : i32
      %27 = arith.select %25, %26, %20 : i32
      %c0_i32_12 = arith.constant 0 : i32
      %28 = arith.cmpi eq, %27, %c0_i32_12 : i32
      %c0 = arith.constant 0 : index
      %c0_13 = arith.constant 0 : index
      %29 = vector.load %arg13[%c0, %c0_13] : memref<64x32xf32, #tpu.memory_space<vmem>>, vector<64x32xf32>
      %c0_14 = arith.constant 0 : index
      %c0_15 = arith.constant 0 : index
      %30 = vector.load %arg14[%c0_14, %c0_15] : memref<64x32xf32, #tpu.memory_space<vmem>>, vector<64x32xf32>
      %31 = arith.select %28, %29, %30 : vector<64x32xf32>
      %32 = arith.index_cast %arg0 : i32 to index
      %c0_16 = arith.constant 0 : index
      %c0_17 = arith.constant 0 : index
      %33 = vector.load %arg4[%32, %c0_16, %c0_17] : memref<3x32x64xbf16, #tpu.memory_space<vmem>>, vector<1x32x64xbf16>
      %34 = vector.shape_cast %33 : vector<1x32x64xbf16> to vector<32x64xbf16>
      %35 = arith.truncf %31 : vector<64x32xf32> to vector<64x32xbf16>
      %cst = arith.constant dense<0.000000e+00> : vector<64x64xf32>
      %36 = tpu.matmul %35, %34, %cst {dimension_numbers = #tpu.dot_dimension_numbers<[1], [0], [0], [1], [0, 0, 1, 1], [], []>} : vector<64x32xbf16>, vector<32x64xbf16>, vector<64x64xf32> -> vector<64x64xf32>
      %37 = vector.extract_strided_slice %36 {offsets = [0, 0], sizes = [64, 32], strides = [1, 1]} : vector<64x64xf32> to vector<64x32xf32>
      %38 = arith.index_cast %arg0 : i32 to index
      %c0_18 = arith.constant 0 : index
      %c0_19 = arith.constant 0 : index
      %39 = vector.load %arg5[%38, %c0_18, %c0_19] : memref<3x1x32xf32, #tpu.memory_space<vmem>>, vector<1x1x32xf32>
      %40 = vector.shape_cast %39 : vector<1x1x32xf32> to vector<1x32xf32>
      %41 = vector.broadcast %40 : vector<1x32xf32> to vector<64x32xf32>
      %42 = arith.addf %37, %41 : vector<64x32xf32>
      %c0_20 = arith.constant 0 : index
      %c0_21 = arith.constant 0 : index
      %43 = vector.load %arg15[%c0_20, %c0_21] : memref<64x32xf32, #tpu.memory_space<vmem>>, vector<64x32xf32>
      tpu.vector_store %arg15[%c0_20, %c0_21], %42 {strides = array<i32>} : memref<64x32xf32, #tpu.memory_space<vmem>>, vector<64x32xf32>,
      %44 = vector.extract_strided_slice %36 {offsets = [0, 32], sizes = [64, 32], strides = [1, 1]} : vector<64x64xf32> to vector<64x32xf32>
      %45 = arith.truncf %44 : vector<64x32xf32> to vector<64x32xbf16>
      %c0_22 = arith.constant 0 : index
      %c0_23 = arith.constant 0 : index
      %46 = vector.load %arg16[%c0_22, %c0_23] : memref<64x32xbf16, #tpu.memory_space<vmem>>, vector<64x32xbf16>
      tpu.vector_store %arg16[%c0_22, %c0_23], %45 {strides = array<i32>} : memref<64x32xbf16, #tpu.memory_space<vmem>>, vector<64x32xbf16>,
    } else {
    }
    %c3_i32_4 = arith.constant 3 : i32
    %12 = arith.cmpi slt, %arg0, %c3_i32_4 : i32
    %13 = arith.extui %12 : i1 to i32
    %c0_i32_5 = arith.constant 0 : i32
    %14 = arith.cmpi ne, %13, %c0_i32_5 : i32
    scf.if %14 {
      %c2_i32 = arith.constant 2 : i32
      %c0_i32_8 = arith.constant 0 : i32
      %18 = arith.cmpi eq, %c2_i32, %c0_i32_8 : i32
      %c1_i32 = arith.constant 1 : i32
      %19 = arith.select %18, %c1_i32, %c2_i32 : i32
      %20 = arith.remsi %arg0, %19 : i32
      %c0_i32_9 = arith.constant 0 : i32
      %21 = arith.cmpi ne, %20, %c0_i32_9 : i32
      %c0_i32_10 = arith.constant 0 : i32
      %22 = arith.cmpi slt, %20, %c0_i32_10 : i32
      %c0_i32_11 = arith.constant 0 : i32
      %23 = arith.cmpi slt, %19, %c0_i32_11 : i32
      %24 = arith.xori %22, %23 : i1
      %25 = arith.andi %24, %21 : i1
      %26 = arith.addi %20, %19 : i32
      %27 = arith.select %25, %26, %20 : i32
      %c0 = arith.constant 0 : index
      %c0_12 = arith.constant 0 : index
      %28 = vector.load %arg2[%c0, %c0_12] : memref<32x64xbf16, #tpu.memory_space<vmem>>, vector<32x64xbf16>
      %c0_13 = arith.constant 0 : index
      %c0_14 = arith.constant 0 : index
      %29 = vector.load %arg16[%c0_13, %c0_14] : memref<64x32xbf16, #tpu.memory_space<vmem>>, vector<64x32xbf16>
      %cst = arith.constant dense<0.000000e+00> : vector<32x32xf32>
      %30 = tpu.matmul %28, %29, %cst {dimension_numbers = #tpu.dot_dimension_numbers<[1], [0], [0], [1], [0, 0, 1, 1], [], []>} : vector<32x64xbf16>, vector<64x32xbf16>, vector<32x32xf32> -> vector<32x32xf32>
      %31 = arith.index_cast %1 : i32 to index
      %c0_15 = arith.constant 0 : index
      %32 = vector.load %arg15[%31, %c0_15] : memref<64x32xf32, #tpu.memory_space<vmem>>, vector<32x32xf32>
      %33 = arith.addf %32, %30 : vector<32x32xf32>
      %cst_16 = arith.constant 0.000000e+00 : f32
      %34 = vector.broadcast %cst_16 : f32 to vector<32x32xf32>
      %35 = arith.maximumf %33, %34 : vector<32x32xf32>
      %c0_i32_17 = arith.constant 0 : i32
      %36 = arith.cmpi eq, %27, %c0_i32_17 : i32
      %37 = arith.index_cast %1 : i32 to index
      %c0_18 = arith.constant 0 : index
      %38 = vector.load %arg13[%37, %c0_18] : memref<64x32xf32, #tpu.memory_space<vmem>>, vector<32x32xf32>
      %39 = arith.index_cast %1 : i32 to index
      %c0_19 = arith.constant 0 : index
      %40 = vector.load %arg14[%39, %c0_19] : memref<64x32xf32, #tpu.memory_space<vmem>>, vector<32x32xf32>
      %41 = arith.select %36, %38, %40 : vector<32x32xf32>
      %c0_i32_20 = arith.constant 0 : i32
      %42 = arith.cmpi sgt, %arg0, %c0_i32_20 : i32
      %43 = arith.addf %35, %41 : vector<32x32xf32>
      %44 = arith.select %42, %43, %35 : vector<32x32xf32>
      %c1_i32_21 = arith.constant 1 : i32
      %45 = arith.cmpi eq, %27, %c1_i32_21 : i32
      %46 = arith.extui %45 : i1 to i32
      %c0_i32_22 = arith.constant 0 : i32
      %47 = arith.cmpi ne, %46, %c0_i32_22 : i32
      scf.if %47 {
        %51 = arith.index_cast %1 : i32 to index
        %c0_25 = arith.constant 0 : index
        %52 = vector.load %arg13[%51, %c0_25] : memref<64x32xf32, #tpu.memory_space<vmem>>, vector<32x32xf32>
        tpu.vector_store %arg13[%51, %c0_25], %44 {strides = array<i32>} : memref<64x32xf32, #tpu.memory_space<vmem>>, vector<32x32xf32>,
      } else {
      }
      %c0_i32_23 = arith.constant 0 : i32
      %48 = arith.cmpi eq, %27, %c0_i32_23 : i32
      %49 = arith.extui %48 : i1 to i32
      %c0_i32_24 = arith.constant 0 : i32
      %50 = arith.cmpi ne, %49, %c0_i32_24 : i32
      scf.if %50 {
        %51 = arith.index_cast %1 : i32 to index
        %c0_25 = arith.constant 0 : index
        %52 = vector.load %arg14[%51, %c0_25] : memref<64x32xf32, #tpu.memory_space<vmem>>, vector<32x32xf32>
        tpu.vector_store %arg14[%51, %c0_25], %44 {strides = array<i32>} : memref<64x32xf32, #tpu.memory_space<vmem>>, vector<32x32xf32>,
      } else {
      }
    } else {
    }
    %c3_i32_6 = arith.constant 3 : i32
    %15 = arith.cmpi eq, %arg0, %c3_i32_6 : i32
    %16 = arith.extui %15 : i1 to i32
    %c0_i32_7 = arith.constant 0 : i32
    %17 = arith.cmpi ne, %16, %c0_i32_7 : i32
    scf.if %17 {
      %18 = arith.index_cast %1 : i32 to index
      %c0 = arith.constant 0 : index
      %19 = vector.load %arg14[%18, %c0] : memref<64x32xf32, #tpu.memory_space<vmem>>, vector<32x32xf32>
      %20 = arith.truncf %19 : vector<32x32xf32> to vector<32x32xbf16>
      %c0_8 = arith.constant 0 : index
      %c0_9 = arith.constant 0 : index
      %21 = vector.load %arg6[%c0_8, %c0_9] : memref<32x128xbf16, #tpu.memory_space<vmem>>, vector<32x128xbf16>
      %cst = arith.constant dense<0.000000e+00> : vector<32x128xf32>
      %22 = tpu.matmul %20, %21, %cst {dimension_numbers = #tpu.dot_dimension_numbers<[1], [0], [0], [1], [0, 0, 1, 1], [], []>} : vector<32x32xbf16>, vector<32x128xbf16>, vector<32x128xf32> -> vector<32x128xf32>
      %c0_10 = arith.constant 0 : index
      %c0_11 = arith.constant 0 : index
      %23 = vector.load %arg7[%c0_10, %c0_11] : memref<1x128xf32, #tpu.memory_space<vmem>>, vector<1x128xf32>
      %24 = vector.broadcast %23 : vector<1x128xf32> to vector<32x128xf32>
      %25 = arith.addf %22, %24 : vector<32x128xf32>
      %26 = tpu.iota {dimensions = array<i32: 1>} : vector<32x128xi32>
      %c32_i32_12 = arith.constant 32 : i32
      %27 = vector.broadcast %c32_i32_12 : i32 to vector<32x128xi32>
      %28 = arith.cmpi slt, %26, %27 : vector<32x128xi32>
      %c32_i32_13 = arith.constant 32 : i32
      %29 = vector.broadcast %c32_i32_13 : i32 to vector<32x128xi32>
      %30 = arith.cmpi sge, %26, %29 : vector<32x128xi32>
      %c48_i32 = arith.constant 48 : i32
      %31 = vector.broadcast %c48_i32 : i32 to vector<32x128xi32>
      %32 = arith.cmpi slt, %26, %31 : vector<32x128xi32>
      %33 = arith.andi %30, %32 : vector<32x128xi1>
      %cst_14 = arith.constant 0.000000e+00 : f32
      %34 = vector.broadcast %cst_14 : f32 to vector<32x128xf32>
      %35 = arith.select %28, %25, %34 : vector<32x128xi1>, vector<32x128xf32>
      %cst_15 = arith.constant dense<0.000000e+00> : vector<32xf32>
      %36 = vector.multi_reduction <add>, %35, %cst_15 [1] : vector<32x128xf32> to vector<32xf32>
      %37 = vector.shape_cast %36 : vector<32xf32> to vector<32x1xf32>
      %cst_16 = arith.constant 3.125000e-02 : f32
      %38 = vector.broadcast %cst_16 : f32 to vector<32x1xf32>
      %39 = arith.mulf %37, %38 : vector<32x1xf32>
      %cst_17 = arith.constant 0.000000e+00 : f32
      %40 = vector.broadcast %cst_17 : f32 to vector<32x128xf32>
      %41 = arith.select %33, %25, %40 : vector<32x128xi1>, vector<32x128xf32>
      %cst_18 = arith.constant dense<0.000000e+00> : vector<32xf32>
      %42 = vector.multi_reduction <add>, %41, %cst_18 [1] : vector<32x128xf32> to vector<32xf32>
      %43 = vector.shape_cast %42 : vector<32xf32> to vector<32x1xf32>
      %cst_19 = arith.constant 6.250000e-02 : f32
      %44 = vector.broadcast %cst_19 : f32 to vector<32x1xf32>
      %45 = arith.mulf %43, %44 : vector<32x1xf32>
      %46 = vector.shape_cast %39 : vector<32x1xf32> to vector<32x1xf32>
      %47 = vector.broadcast %46 : vector<32x1xf32> to vector<32x128xf32>
      %48 = vector.shape_cast %45 : vector<32x1xf32> to vector<32x1xf32>
      %49 = vector.broadcast %48 : vector<32x1xf32> to vector<32x128xf32>
      %50 = arith.select %28, %47, %49 : vector<32x128xi1>, vector<32x128xf32>
      %51 = arith.subf %25, %50 : vector<32x128xf32>
      %52 = arith.mulf %51, %51 : vector<32x128xf32>
      %cst_20 = arith.constant 0.000000e+00 : f32
      %53 = vector.broadcast %cst_20 : f32 to vector<32x128xf32>
      %54 = arith.select %28, %52, %53 : vector<32x128xi1>, vector<32x128xf32>
      %cst_21 = arith.constant dense<0.000000e+00> : vector<32xf32>
      %55 = vector.multi_reduction <add>, %54, %cst_21 [1] : vector<32x128xf32> to vector<32xf32>
      %56 = vector.shape_cast %55 : vector<32xf32> to vector<32x1xf32>
      %cst_22 = arith.constant 3.125000e-02 : f32
      %57 = vector.broadcast %cst_22 : f32 to vector<32x1xf32>
      %58 = arith.mulf %56, %57 : vector<32x1xf32>
      %59 = arith.mulf %51, %51 : vector<32x128xf32>
      %cst_23 = arith.constant 0.000000e+00 : f32
      %60 = vector.broadcast %cst_23 : f32 to vector<32x128xf32>
      %61 = arith.select %33, %59, %60 : vector<32x128xi1>, vector<32x128xf32>
      %cst_24 = arith.constant dense<0.000000e+00> : vector<32xf32>
      %62 = vector.multi_reduction <add>, %61, %cst_24 [1] : vector<32x128xf32> to vector<32xf32>
      %63 = vector.shape_cast %62 : vector<32xf32> to vector<32x1xf32>
      %cst_25 = arith.constant 6.250000e-02 : f32
      %64 = vector.broadcast %cst_25 : f32 to vector<32x1xf32>
      %65 = arith.mulf %63, %64 : vector<32x1xf32>
      %cst_26 = arith.constant 9.99999974E-6 : f32
      %66 = vector.broadcast %cst_26 : f32 to vector<32x1xf32>
      %67 = arith.addf %58, %66 : vector<32x1xf32>
      %68 = math.rsqrt %67 : vector<32x1xf32>
      %cst_27 = arith.constant 9.99999974E-6 : f32
      %69 = vector.broadcast %cst_27 : f32 to vector<32x1xf32>
      %70 = arith.addf %65, %69 : vector<32x1xf32>
      %71 = math.rsqrt %70 : vector<32x1xf32>
      %72 = vector.shape_cast %68 : vector<32x1xf32> to vector<32x1xf32>
      %73 = vector.broadcast %72 : vector<32x1xf32> to vector<32x128xf32>
      %74 = vector.shape_cast %71 : vector<32x1xf32> to vector<32x1xf32>
      %75 = vector.broadcast %74 : vector<32x1xf32> to vector<32x128xf32>
      %76 = arith.select %28, %73, %75 : vector<32x128xi1>, vector<32x128xf32>
      %77 = arith.mulf %51, %76 : vector<32x128xf32>
      %c0_28 = arith.constant 0 : index
      %c0_29 = arith.constant 0 : index
      %78 = vector.load %arg8[%c0_28, %c0_29] : memref<1x128xf32, #tpu.memory_space<vmem>>, vector<1x128xf32>
      %79 = vector.broadcast %78 : vector<1x128xf32> to vector<32x128xf32>
      %80 = arith.mulf %77, %79 : vector<32x128xf32>
      %c0_30 = arith.constant 0 : index
      %c0_31 = arith.constant 0 : index
      %81 = vector.load %arg9[%c0_30, %c0_31] : memref<1x128xf32, #tpu.memory_space<vmem>>, vector<1x128xf32>
      %82 = vector.broadcast %81 : vector<1x128xf32> to vector<32x128xf32>
      %83 = arith.addf %80, %82 : vector<32x128xf32>
      %cst_32 = arith.constant 0.000000e+00 : f32
      %84 = vector.broadcast %cst_32 : f32 to vector<32x128xf32>
      %85 = arith.maximumf %83, %84 : vector<32x128xf32>
      %86 = arith.truncf %85 : vector<32x128xf32> to vector<32x128xbf16>
      %c0_33 = arith.constant 0 : index
      %c0_34 = arith.constant 0 : index
      %87 = vector.load %arg10[%c0_33, %c0_34] : memref<128x128xbf16, #tpu.memory_space<vmem>>, vector<128x128xbf16>
      %cst_35 = arith.constant dense<0.000000e+00> : vector<32x128xf32>
      %88 = tpu.matmul %86, %87, %cst_35 {dimension_numbers = #tpu.dot_dimension_numbers<[1], [0], [0], [1], [0, 0, 1, 1], [], []>} : vector<32x128xbf16>, vector<128x128xbf16>, vector<32x128xf32> -> vector<32x128xf32>
      %c0_36 = arith.constant 0 : index
      %c0_37 = arith.constant 0 : index
      %89 = vector.load %arg11[%c0_36, %c0_37] : memref<1x128xf32, #tpu.memory_space<vmem>>, vector<1x128xf32>
      %90 = vector.broadcast %89 : vector<1x128xf32> to vector<32x128xf32>
      %91 = arith.addf %88, %90 : vector<32x128xf32>
      %92 = tpu.iota {dimensions = array<i32: 1>} : vector<32x128xi32>
      %c2_i32 = arith.constant 2 : i32
      %93 = vector.broadcast %c2_i32 : i32 to vector<32x128xi32>
      %94 = arith.cmpi slt, %92, %93 : vector<32x128xi32>
      %cst_38 = arith.constant 0.000000e+00 : f32
      %95 = vector.broadcast %cst_38 : f32 to vector<32x128xf32>
      %96 = arith.select %94, %91, %95 : vector<32x128xi1>, vector<32x128xf32>
      %c2_i32_39 = arith.constant 2 : i32
      %97 = vector.broadcast %c2_i32_39 : i32 to vector<32x128xi32>
      %98 = arith.cmpi eq, %92, %97 : vector<32x128xi32>
      %cst_40 = arith.constant 0.000000e+00 : f32
      %99 = vector.broadcast %cst_40 : f32 to vector<32x128xf32>
      %100 = arith.select %98, %91, %99 : vector<32x128xi1>, vector<32x128xf32>
      %cst_41 = arith.constant dense<0.000000e+00> : vector<32xf32>
      %101 = vector.multi_reduction <add>, %100, %cst_41 [1] : vector<32x128xf32> to vector<32xf32>
      %102 = vector.shape_cast %101 : vector<32xf32> to vector<32x1xf32>
      %103 = arith.negf %102 : vector<32x1xf32>
      %104 = math.exp %103 : vector<32x1xf32>
      %cst_42 = arith.constant 1.000000e+00 : f32
      %105 = vector.broadcast %cst_42 : f32 to vector<32x1xf32>
      %106 = arith.addf %105, %104 : vector<32x1xf32>
      %107 = arith.divf %105, %106 : vector<32x1xf32>
      %108 = arith.mulf %96, %96 : vector<32x128xf32>
      %cst_43 = arith.constant dense<0.000000e+00> : vector<32xf32>
      %109 = vector.multi_reduction <add>, %108, %cst_43 [1] : vector<32x128xf32> to vector<32xf32>
      %110 = vector.shape_cast %109 : vector<32xf32> to vector<32x1xf32>
      %cst_44 = arith.constant 9.99999996E-13 : f32
      %111 = vector.broadcast %cst_44 : f32 to vector<32x1xf32>
      %112 = arith.addf %110, %111 : vector<32x1xf32>
      %113 = math.rsqrt %112 : vector<32x1xf32>
      %114 = arith.mulf %107, %113 : vector<32x1xf32>
      %115 = vector.broadcast %114 : vector<32x1xf32> to vector<32x128xf32>
      %116 = arith.mulf %96, %115 : vector<32x128xf32>
      %c0_45 = arith.constant 0 : index
      %c0_46 = arith.constant 0 : index
      %117 = vector.load %arg12[%c0_45, %c0_46] : memref<32x128xf32, #tpu.memory_space<vmem>>, vector<32x128xf32>
      tpu.vector_store %arg12[%c0_45, %c0_46], %116 {strides = array<i32>} : memref<32x128xf32, #tpu.memory_space<vmem>>, vector<32x128xf32>,
    } else {
    }
    return
  }
  func.func @transform_0(%arg0: i32, %arg1: i32) -> (i32, i32) {
    %c0_i32 = arith.constant 0 : i32
    %c0_i32_0 = arith.constant 0 : i32
    return %arg1, %c0_i32 : i32, i32
  }
  func.func @transform_1(%arg0: i32, %arg1: i32) -> (i32, i32) {
    %c0_i32 = arith.constant 0 : i32
    %c0_i32_0 = arith.constant 0 : i32
    %c0_i32_1 = arith.constant 0 : i32
    return %c0_i32, %c0_i32_0 : i32, i32
  }
  func.func @transform_2(%arg0: i32, %arg1: i32) -> (i32, i32, i32) {
    %c0_i32 = arith.constant 0 : i32
    %c0_i32_0 = arith.constant 0 : i32
    %c0_i32_1 = arith.constant 0 : i32
    %c0_i32_2 = arith.constant 0 : i32
    return %c0_i32, %c0_i32_0, %c0_i32_1 : i32, i32, i32
  }
  func.func @transform_3(%arg0: i32, %arg1: i32) -> (i32, i32, i32) {
    %c0_i32 = arith.constant 0 : i32
    %c0_i32_0 = arith.constant 0 : i32
    %c0_i32_1 = arith.constant 0 : i32
    %c0_i32_2 = arith.constant 0 : i32
    return %c0_i32, %c0_i32_0, %c0_i32_1 : i32, i32, i32
  }
  func.func @transform_4(%arg0: i32, %arg1: i32) -> (i32, i32) {
    %c0_i32 = arith.constant 0 : i32
    %c0_i32_0 = arith.constant 0 : i32
    %c0_i32_1 = arith.constant 0 : i32
    return %c0_i32, %c0_i32_0 : i32, i32
  }
  func.func @transform_5(%arg0: i32, %arg1: i32) -> (i32, i32) {
    %c0_i32 = arith.constant 0 : i32
    %c0_i32_0 = arith.constant 0 : i32
    %c0_i32_1 = arith.constant 0 : i32
    return %c0_i32, %c0_i32_0 : i32, i32
  }
  func.func @transform_6(%arg0: i32, %arg1: i32) -> (i32, i32) {
    %c0_i32 = arith.constant 0 : i32
    %c0_i32_0 = arith.constant 0 : i32
    %c0_i32_1 = arith.constant 0 : i32
    return %c0_i32, %c0_i32_0 : i32, i32
  }
  func.func @transform_7(%arg0: i32, %arg1: i32) -> (i32, i32) {
    %c0_i32 = arith.constant 0 : i32
    %c0_i32_0 = arith.constant 0 : i32
    %c0_i32_1 = arith.constant 0 : i32
    return %c0_i32, %c0_i32_0 : i32, i32
  }
  func.func @transform_8(%arg0: i32, %arg1: i32) -> (i32, i32) {
    %c0_i32 = arith.constant 0 : i32
    %c0_i32_0 = arith.constant 0 : i32
    %c0_i32_1 = arith.constant 0 : i32
    return %c0_i32, %c0_i32_0 : i32, i32
  }
  func.func @transform_9(%arg0: i32, %arg1: i32) -> (i32, i32) {
    %c0_i32 = arith.constant 0 : i32
    %c0_i32_0 = arith.constant 0 : i32
    %c0_i32_1 = arith.constant 0 : i32
    return %c0_i32, %c0_i32_0 : i32, i32
  }
  func.func @transform_10(%arg0: i32, %arg1: i32) -> (i32, i32) {
    %c0_i32 = arith.constant 0 : i32
    %c0_i32_0 = arith.constant 0 : i32
    return %arg1, %c0_i32 : i32, i32
  }
}

</mosaic_0001>

<llo_original>
// kernel: tpu_custom_call.1
$region0: #{tpu_custom_call.1}
  #allocation0 [shape = 'u32[]', space=smem, size = 0x4, offset = 0x4, fixed_abs, tag = 'smem constant byte address 0x4 - core index']
  #allocation1 [shape = 'u32[144,128]{1,0:T(1,128)}', space=vmem, size = 0x12000, scoped, tag = 'internal scratch']
  #allocation2 [shape = 'f32[64,32]{1,0:T(8,128)}', space=vmem, size = 0x8000, scoped, tag = 'scratch operand']
  #allocation3 [shape = 'f32[64,32]{1,0:T(8,128)}', space=vmem, size = 0x8000, scoped, tag = 'scratch operand']
  #allocation4 [shape = 'f32[64,32]{1,0:T(8,128)}', space=vmem, size = 0x8000, scoped, tag = 'scratch operand']
  #allocation5 [shape = 'bf16[64,32]{1,0:T(16,128)(2,1)}', space=vmem, size = 0x4000, scoped, tag = 'scratch operand']
  %s0 = inlined_call_operand.hbm [shape: bf16[64,64], index: 0, kind: input, shape index: {}]
  %s1 = inlined_call_operand.vmem [shape: f32[64,32], index: 1, kind: input, shape index: {}]
  %s2 = inlined_call_operand.vmem [shape: bf16[3,32,64], index: 2, kind: input, shape index: {}]
  %s3 = inlined_call_operand.vmem [shape: f32[3,1,32], index: 3, kind: input, shape index: {}]
  %s4 = inlined_call_operand.hbm [shape: bf16[32,128], index: 4, kind: input, shape index: {}]
  %s5 = inlined_call_operand.vmem [shape: f32[1,128], index: 5, kind: input, shape index: {}]
  %s6 = inlined_call_operand.vmem [shape: f32[1,128], index: 6, kind: input, shape index: {}]
  %s7 = inlined_call_operand.vmem [shape: f32[1,128], index: 7, kind: input, shape index: {}]
  %s8 = inlined_call_operand.vmem [shape: bf16[128,128], index: 8, kind: input, shape index: {}]
  %s9 = inlined_call_operand.vmem [shape: f32[1,128], index: 9, kind: input, shape index: {}]
  %s10 = inlined_call_operand.hbm [shape: f32[64,128], index: 10, kind: output, shape index: {}]
  %s11 = sld [smem:[#allocation0]]
  $region105: #{tpu_custom_call.1} parent=0
    _
  %s13 = ssub.s32 1, %s11
  %s14 = scalar_select 0, %s13, %s11
  $region1: #{tpu_custom_call.1} parent=0
    #allocation6 [shape = 'u8[16384]{0}', space=vmem, size = 0x4000, scoped, tag = 'input window, operand 0']
    #allocation7 [shape = 's32[2]{0}', space=sflag, size = 0x8, scoped, tag = 'scoped memory for tpu_custom_call.1']
    #allocation8 [shape = 's32[2]{0}', space=sflag, size = 0x8, scoped, tag = 'scoped memory for tpu_custom_call.1']
    #allocation9 [shape = 'u8[8192]{0}', space=vmem, size = 0x2000, scoped, tag = 'input window, operand 4, single buffered']
    #allocation10 [shape = 's32[1]{0}', space=sflag, size = 0x4, scoped, tag = 'scoped memory for tpu_custom_call.1']
    #allocation11 [shape = 'u8[32768]{0}', space=vmem, size = 0x8000, scoped, tag = 'output window, operand 0']
    %15 = vsyncpa [#allocation7], 0
    %s16 = scalar_lea.sflag [#allocation7], 1
    %17 = vsyncpa %s16, 0
    %18 = vsyncpa [#allocation10], 0
    %19 = vsyncpa [#allocation8], 0
    %s20 = scalar_lea.sflag [#allocation8], 1
    %21 = vsyncpa %s20, 0
    loop: start=0, step=1, limit=10
    $region2: #{tpu_custom_call.1} parent=1 // loop_pre_header
      _
    $region3: #{tpu_custom_call.1} parent=1 // loop_header
      %s23 = sphi 0, %s27
      %p24 = scmp.ge.s32.totalorder %s23, 10
      %s30 = sphi 0, %s42
      %s31 = sphi 0, %s38
      %s32 = sphi 0, %s30
      %s33 = sphi 0, %s31
      %s34 = sphi 0, %s32
      %s35 = sphi 0, %s33
      %s45 = sphi 0, %s47
      %s48 = sphi 0, %s45
      %s49 = sphi 0, %s48
      %s65 = sphi 0, %s49
      %s69 = sphi 0, %s69
      %s71 = sphi 0, %s69
      %s72 = sphi 0, %s71
      %s86 = sphi 0, %s72
      %s90 = sphi 0, %s90
      %s92 = sphi 0, %s90
      %s93 = sphi 0, %s92
      %s107 = sphi 0, %s93
      %s111 = sphi 0, %s111
      %s113 = sphi 0, %s111
      %s114 = sphi 0, %s113
      %s128 = sphi 0, %s114
      %s132 = sphi 0, %s132
      %s134 = sphi 0, %s132
      %s135 = sphi 0, %s134
      %s149 = sphi 0, %s135
      %s153 = sphi 0, %s153
      %s155 = sphi 0, %s153
      %s156 = sphi 0, %s155
      %s170 = sphi 0, %s156
      %s174 = sphi 0, %s174
      %s176 = sphi 0, %s174
      %s177 = sphi 0, %s176
      %s191 = sphi 0, %s177
      %s195 = sphi 0, %s195
      %s197 = sphi 0, %s195
      %s198 = sphi 0, %s197
      %s212 = sphi 0, %s198
      %s216 = sphi 0, %s216
      %s218 = sphi 0, %s216
      %s219 = sphi 0, %s218
      %s233 = sphi 0, %s219
      %s237 = sphi 0, %s237
      %s239 = sphi 0, %s237
      %s240 = sphi 0, %s239
      %s254 = sphi 0, %s240
      %s260 = sphi 0, %s262
      %s263 = sphi 0, %s260
      %s264 = sphi 0, %s263
      %s280 = sphi 0, %s264
    $region4: #{tpu_custom_call.1} parent=1 // loop_header_branch
      %26 = sbr.rel (%p24) target = $region8
    $region5: #{tpu_custom_call.1} parent=1 // loop_body
      %s28 = ssub.s32 %s23, 1
      %s29 = ssub.s32 %s23, 2
      %s36 = sadd.s32 1, %s31
      %p37 = scmp.ge.s32.totalorder %s36, 2
      %s38 = scalar_select %p37, 0, %s36
      %s39 = sadd.s32 1, %s30
      %s40 = scalar_select %p37, %s39, %s30
      %p41 = scmp.ge.s32.totalorder %s40, 4
      %s42 = scalar_select %p41, 0, %s40
      %s43 = ssub.s32 %s31, %s38
      %p44 = scmp.eq.s32.totalorder %s43, 0
      %s46 = sadd.s32 %s45, 1
      %s47 = scalar_select %p44, %s45, %s46
      %p50 = pneg %p44
      %p51 = scmp.eq.s32.totalorder %s23, 7
      %p52 = por %p50, %p51
      %p53 = scmp.ne.s32.totalorder %s45, %s48
      %p54 = scmp.eq.s32.totalorder %s23, 0
      %p55 = por %p53, %p54
      %p56 = scmp.ne.s32.totalorder %s45, %s48
      %p57 = scmp.eq.s32.totalorder %s28, 7
      %p58 = por %p56, %p57
      %p59 = scmp.ne.s32.totalorder %s48, %s49
      %p60 = scmp.eq.s32.totalorder %s28, 0
      %p61 = por %p59, %p60
      %p62 = scmp.ne.s32.totalorder %s48, %s49
      %p63 = scmp.eq.s32.totalorder %s29, 7
      %p64 = por %p62, %p63
      %p66 = scmp.ne.s32.totalorder %s49, %s65
      %p67 = scmp.eq.s32.totalorder %s29, 0
      %p68 = por %p66, %p67
      %s70 = sadd.s32 %s69, 1
      %p73 = scmp.eq.s32.totalorder %s23, 7
      %p74 = scmp.ne.s32.totalorder %s69, %s71
      %p75 = scmp.eq.s32.totalorder %s23, 0
      %p76 = por %p74, %p75
      %p77 = scmp.ne.s32.totalorder %s69, %s71
      %p78 = scmp.eq.s32.totalorder %s28, 7
      %p79 = por %p77, %p78
      %p80 = scmp.ne.s32.totalorder %s71, %s72
      %p81 = scmp.eq.s32.totalorder %s28, 0
      %p82 = por %p80, %p81
      %p83 = scmp.ne.s32.totalorder %s71, %s72
      %p84 = scmp.eq.s32.totalorder %s29, 7
      %p85 = por %p83, %p84
      %p87 = scmp.ne.s32.totalorder %s72, %s86
      %p88 = scmp.eq.s32.totalorder %s29, 0
      %p89 = por %p87, %p88
      %s91 = sadd.s32 %s90, 1
      %p94 = scmp.eq.s32.totalorder %s23, 7
      %p95 = scmp.ne.s32.totalorder %s90, %s92
      %p96 = scmp.eq.s32.totalorder %s23, 0
      %p97 = por %p95, %p96
      %p98 = scmp.ne.s32.totalorder %s90, %s92
      %p99 = scmp.eq.s32.totalorder %s28, 7
      %p100 = por %p98, %p99
      %p101 = scmp.ne.s32.totalorder %s92, %s93
      %p102 = scmp.eq.s32.totalorder %s28, 0
      %p103 = por %p101, %p102
      %p104 = scmp.ne.s32.totalorder %s92, %s93
      %p105 = scmp.eq.s32.totalorder %s29, 7
      %p106 = por %p104, %p105
      %p108 = scmp.ne.s32.totalorder %s93, %s107
      %p109 = scmp.eq.s32.totalorder %s29, 0
      %p110 = por %p108, %p109
      %s112 = sadd.s32 %s111, 1
      %p115 = scmp.eq.s32.totalorder %s23, 7
      %p116 = scmp.ne.s32.totalorder %s111, %s113
      %p117 = scmp.eq.s32.totalorder %s23, 0
      %p118 = por %p116, %p117
      %p119 = scmp.ne.s32.totalorder %s111, %s113
      %p120 = scmp.eq.s32.totalorder %s28, 7
      %p121 = por %p119, %p120
      %p122 = scmp.ne.s32.totalorder %s113, %s114
      %p123 = scmp.eq.s32.totalorder %s28, 0
      %p124 = por %p122, %p123
      %p125 = scmp.ne.s32.totalorder %s113, %s114
      %p126 = scmp.eq.s32.totalorder %s29, 7
      %p127 = por %p125, %p126
      %p129 = scmp.ne.s32.totalorder %s114, %s128
      %p130 = scmp.eq.s32.totalorder %s29, 0
      %p131 = por %p129, %p130
      %s133 = sadd.s32 %s132, 1
      %p136 = scmp.eq.s32.totalorder %s23, 7
      %p137 = scmp.ne.s32.totalorder %s132, %s134
      %p138 = scmp.eq.s32.totalorder %s23, 0
      %p139 = por %p137, %p138
      %p140 = scmp.ne.s32.totalorder %s132, %s134
      %p141 = scmp.eq.s32.totalorder %s28, 7
      %p142 = por %p140, %p141
      %p143 = scmp.ne.s32.totalorder %s134, %s135
      %p144 = scmp.eq.s32.totalorder %s28, 0
      %p145 = por %p143, %p144
      %p146 = scmp.ne.s32.totalorder %s134, %s135
      %p147 = scmp.eq.s32.totalorder %s29, 7
      %p148 = por %p146, %p147
      %p150 = scmp.ne.s32.totalorder %s135, %s149
      %p151 = scmp.eq.s32.totalorder %s29, 0
      %p152 = por %p150, %p151
      %s154 = sadd.s32 %s153, 1
      %p157 = scmp.eq.s32.totalorder %s23, 7
      %p158 = scmp.ne.s32.totalorder %s153, %s155
      %p159 = scmp.eq.s32.totalorder %s23, 0
      %p160 = por %p158, %p159
      %p161 = scmp.ne.s32.totalorder %s153, %s155
      %p162 = scmp.eq.s32.totalorder %s28, 7
      %p163 = por %p161, %p162
      %p164 = scmp.ne.s32.totalorder %s155, %s156
      %p165 = scmp.eq.s32.totalorder %s28, 0
      %p166 = por %p164, %p165
      %p167 = scmp.ne.s32.totalorder %s155, %s156
      %p168 = scmp.eq.s32.totalorder %s29, 7
      %p169 = por %p167, %p168
      %p171 = scmp.ne.s32.totalorder %s156, %s170
      %p172 = scmp.eq.s32.totalorder %s29, 0
      %p173 = por %p171, %p172
      %s175 = sadd.s32 %s174, 1
      %p178 = scmp.eq.s32.totalorder %s23, 7
      %p179 = scmp.ne.s32.totalorder %s174, %s176
      %p180 = scmp.eq.s32.totalorder %s23, 0
      %p181 = por %p179, %p180
      %p182 = scmp.ne.s32.totalorder %s174, %s176
      %p183 = scmp.eq.s32.totalorder %s28, 7
      %p184 = por %p182, %p183
      %p185 = scmp.ne.s32.totalorder %s176, %s177
      %p186 = scmp.eq.s32.totalorder %s28, 0
      %p187 = por %p185, %p186
      %p188 = scmp.ne.s32.totalorder %s176, %s177
      %p189 = scmp.eq.s32.totalorder %s29, 7
      %p190 = por %p188, %p189
      %p192 = scmp.ne.s32.totalorder %s177, %s191
      %p193 = scmp.eq.s32.totalorder %s29, 0
      %p194 = por %p192, %p193
      %s196 = sadd.s32 %s195, 1
      %p199 = scmp.eq.s32.totalorder %s23, 7
      %p200 = scmp.ne.s32.totalorder %s195, %s197
      %p201 = scmp.eq.s32.totalorder %s23, 0
      %p202 = por %p200, %p201
      %p203 = scmp.ne.s32.totalorder %s195, %s197
      %p204 = scmp.eq.s32.totalorder %s28, 7
      %p205 = por %p203, %p204
      %p206 = scmp.ne.s32.totalorder %s197, %s198
      %p207 = scmp.eq.s32.totalorder %s28, 0
      %p208 = por %p206, %p207
      %p209 = scmp.ne.s32.totalorder %s197, %s198
      %p210 = scmp.eq.s32.totalorder %s29, 7
      %p211 = por %p209, %p210
      %p213 = scmp.ne.s32.totalorder %s198, %s212
      %p214 = scmp.eq.s32.totalorder %s29, 0
      %p215 = por %p213, %p214
      %s217 = sadd.s32 %s216, 1
      %p220 = scmp.eq.s32.totalorder %s23, 7
      %p221 = scmp.ne.s32.totalorder %s216, %s218
      %p222 = scmp.eq.s32.totalorder %s23, 0
      %p223 = por %p221, %p222
      %p224 = scmp.ne.s32.totalorder %s216, %s218
      %p225 = scmp.eq.s32.totalorder %s28, 7
      %p226 = por %p224, %p225
      %p227 = scmp.ne.s32.totalorder %s218, %s219
      %p228 = scmp.eq.s32.totalorder %s28, 0
      %p229 = por %p227, %p228
      %p230 = scmp.ne.s32.totalorder %s218, %s219
      %p231 = scmp.eq.s32.totalorder %s29, 7
      %p232 = por %p230, %p231
      %p234 = scmp.ne.s32.totalorder %s219, %s233
      %p235 = scmp.eq.s32.totalorder %s29, 0
      %p236 = por %p234, %p235
      %s238 = sadd.s32 %s237, 1
      %p241 = scmp.eq.s32.totalorder %s23, 7
      %p242 = scmp.ne.s32.totalorder %s237, %s239
      %p243 = scmp.eq.s32.totalorder %s23, 0
      %p244 = por %p242, %p243
      %p245 = scmp.ne.s32.totalorder %s237, %s239
      %p246 = scmp.eq.s32.totalorder %s28, 7
      %p247 = por %p245, %p246
      %p248 = scmp.ne.s32.totalorder %s239, %s240
      %p249 = scmp.eq.s32.totalorder %s28, 0
      %p250 = por %p248, %p249
      %p251 = scmp.ne.s32.totalorder %s239, %s240
      %p252 = scmp.eq.s32.totalorder %s29, 7
      %p253 = por %p251, %p252
      %p255 = scmp.ne.s32.totalorder %s240, %s254
      %p256 = scmp.eq.s32.totalorder %s29, 0
      %p257 = por %p255, %p256
      %s258 = ssub.s32 %s31, %s38
      %p259 = scmp.eq.s32.totalorder %s258, 0
      %s261 = sadd.s32 %s260, 1
      %s262 = scalar_select %p259, %s260, %s261
      %p265 = pneg %p259
      %p266 = scmp.eq.s32.totalorder %s23, 7
      %p267 = por %p265, %p266
      %p268 = scmp.ne.s32.totalorder %s260, %s263
      %p269 = scmp.eq.s32.totalorder %s23, 0
      %p270 = por %p268, %p269
      %p271 = scmp.ne.s32.totalorder %s260, %s263
      %p272 = scmp.eq.s32.totalorder %s28, 7
      %p273 = por %p271, %p272
      %p274 = scmp.ne.s32.totalorder %s263, %s264
      %p275 = scmp.eq.s32.totalorder %s28, 0
      %p276 = por %p274, %p275
      %p277 = scmp.ne.s32.totalorder %s263, %s264
      %p278 = scmp.eq.s32.totalorder %s29, 7
      %p279 = por %p277, %p278
      %p281 = scmp.ne.s32.totalorder %s264, %s280
      %p282 = scmp.eq.s32.totalorder %s29, 0
      %p283 = por %p281, %p282
      %p284 = scmp.le.s32.totalorder 1, %s23
      %p285 = scmp.lt.s32.totalorder %s23, 9
      %p286 = pnand %p284, %p285
      %p287 = pneg %p286
      // Predicated region
      $region9: #{tpu_custom_call.1} parent=5 // pred_check
        _
      $region10: #{tpu_custom_call.1} parent=5 // pred_check_branch
        %289 = sbr.rel (%p286) target = $region12
      $region11: #{tpu_custom_call.1} parent=5 // pred_region
        %s290 = ssub.s32 %s23, 1
        // Predicated region
        $region13: #{tpu_custom_call.1} parent=11 // pred_check
          %p291 = pneg %p82
        $region14: #{tpu_custom_call.1} parent=11 // pred_check_branch
          %293 = sbr.rel (%p291) target = $region16
        $region15: #{tpu_custom_call.1} parent=11 // pred_region
          _
        $region16: #{tpu_custom_call.1} parent=11 // pred_fallthru
          _
        // Predicated region
        $region17: #{tpu_custom_call.1} parent=11 // pred_check
          %p294 = pneg %p103
        $region18: #{tpu_custom_call.1} parent=11 // pred_check_branch
          %296 = sbr.rel (%p294) target = $region20
        $region19: #{tpu_custom_call.1} parent=11 // pred_region
          _
        $region20: #{tpu_custom_call.1} parent=11 // pred_fallthru
          _
        // Predicated region
        $region21: #{tpu_custom_call.1} parent=11 // pred_check
          %p297 = pneg %p124
        $region22: #{tpu_custom_call.1} parent=11 // pred_check_branch
          %299 = sbr.rel (%p297) target = $region24
        $region23: #{tpu_custom_call.1} parent=11 // pred_region
          _
        $region24: #{tpu_custom_call.1} parent=11 // pred_fallthru
          _
        // Predicated region
        $region25: #{tpu_custom_call.1} parent=11 // pred_check
          %p300 = pneg %p145
        $region26: #{tpu_custom_call.1} parent=11 // pred_check_branch
          %302 = sbr.rel (%p300) target = $region28
        $region27: #{tpu_custom_call.1} parent=11 // pred_region
          %s304 = ssub.s32 256, 256
          %305 = vsyncadd [#allocation10], %s304
          %s306 = sshll.u32 [#allocation9], 4
          %s307 = int_to_ptr.vmem [resolvable:$true] %s306
          %312 = dma.hbm_to_vmem [thread:$0]  %s4, 256, %s307, [#allocation10], 64, 64, 4
        $region28: #{tpu_custom_call.1} parent=11 // pred_fallthru
          _
        // Predicated region
        $region29: #{tpu_custom_call.1} parent=11 // pred_check
          %p313 = pneg %p166
        $region30: #{tpu_custom_call.1} parent=11 // pred_check_branch
          %315 = sbr.rel (%p313) target = $region32
        $region31: #{tpu_custom_call.1} parent=11 // pred_region
          _
        $region32: #{tpu_custom_call.1} parent=11 // pred_fallthru
          _
        // Predicated region
        $region33: #{tpu_custom_call.1} parent=11 // pred_check
          %p316 = pneg %p187
        $region34: #{tpu_custom_call.1} parent=11 // pred_check_branch
          %318 = sbr.rel (%p316) target = $region36
        $region35: #{tpu_custom_call.1} parent=11 // pred_region
          _
        $region36: #{tpu_custom_call.1} parent=11 // pred_fallthru
          _
        // Predicated region
        $region37: #{tpu_custom_call.1} parent=11 // pred_check
          %p319 = pneg %p208
        $region38: #{tpu_custom_call.1} parent=11 // pred_check_branch
          %321 = sbr.rel (%p319) target = $region40
        $region39: #{tpu_custom_call.1} parent=11 // pred_region
          _
        $region40: #{tpu_custom_call.1} parent=11 // pred_fallthru
          _
        // Predicated region
        $region41: #{tpu_custom_call.1} parent=11 // pred_check
          %p322 = pneg %p229
        $region42: #{tpu_custom_call.1} parent=11 // pred_check_branch
          %324 = sbr.rel (%p322) target = $region44
        $region43: #{tpu_custom_call.1} parent=11 // pred_region
          _
        $region44: #{tpu_custom_call.1} parent=11 // pred_fallthru
          _
        // Predicated region
        $region45: #{tpu_custom_call.1} parent=11 // pred_check
          %p325 = pneg %p250
        $region46: #{tpu_custom_call.1} parent=11 // pred_check_branch
          %327 = sbr.rel (%p325) target = $region48
        $region47: #{tpu_custom_call.1} parent=11 // pred_region
          _
        $region48: #{tpu_custom_call.1} parent=11 // pred_fallthru
          _
      $region12: #{tpu_custom_call.1} parent=5 // pred_fallthru
        _
      %p328 = scmp.lt.s32.totalorder %s23, 8
      // Predicated region
      $region49: #{tpu_custom_call.1} parent=5 // pred_check
        %p329 = pneg %p328
      $region50: #{tpu_custom_call.1} parent=5 // pred_check_branch
        %331 = sbr.rel (%p329) target = $region52
      $region51: #{tpu_custom_call.1} parent=5 // pred_region
        // Predicated region
        $region53: #{tpu_custom_call.1} parent=51 // pred_check
          %p332 = pneg %p55
        $region54: #{tpu_custom_call.1} parent=51 // pred_check_branch
          %334 = sbr.rel (%p332) target = $region56
        $region55: #{tpu_custom_call.1} parent=51 // pred_region
          %s335 = sand.u32 %s45, 1
          %s336 = scalar_lea.sflag [#allocation7], %s335
          %s337 = sand.u32 %s45, 1
          %s338 = smul.addr %s337, 16
          %s339 = scalar_lea.vmem [#allocation6], %s338
          %s340 = smul.u32 4, %s31
          %s342 = ssub.s32 256, 256
          %343 = vsyncadd %s336, %s342
          %s344 = smul.addr %s340, 64
          %s345 = scalar_lea.hbm %s0, %s344
          %s346 = sshll.u32 %s339, 4
          %s347 = int_to_ptr.vmem [resolvable:$true] %s346
          %352 = dma.hbm_to_vmem [thread:$0]  %s345, 256, %s347, %s336, 64, 64, 4
        $region56: #{tpu_custom_call.1} parent=51 // pred_fallthru
          _
      $region52: #{tpu_custom_call.1} parent=5 // pred_fallthru
        _
      %p353 = scmp.le.s32.totalorder 1, %s23
      %p354 = scmp.lt.s32.totalorder %s23, 9
      %p355 = pnand %p353, %p354
      %p356 = pneg %p355
      // Predicated region
      $region57: #{tpu_custom_call.1} parent=5 // pred_check
        _
      $region58: #{tpu_custom_call.1} parent=5 // pred_check_branch
        %358 = sbr.rel (%p355) target = $region60
      $region59: #{tpu_custom_call.1} parent=5 // pred_region
        %s359 = ssub.s32 %s23, 1
        %s360 = sand.u32 %s48, 1
        %s361 = scalar_lea.sflag [#allocation7], %s360
        %s362 = sand.u32 %s48, 1
        %s363 = smul.addr %s362, 16
        %s364 = scalar_lea.vmem [#allocation6], %s363
        // Predicated region
        $region61: #{tpu_custom_call.1} parent=59 // pred_check
          %p365 = pneg %p61
        $region62: #{tpu_custom_call.1} parent=59 // pred_check_branch
          %367 = sbr.rel (%p365) target = $region64
        $region63: #{tpu_custom_call.1} parent=59 // pred_region
          %368 = dma.done %s361, 256
        $region64: #{tpu_custom_call.1} parent=59 // pred_fallthru
          _
        // Predicated region
        $region65: #{tpu_custom_call.1} parent=59 // pred_check
          %p369 = pneg %p145
        $region66: #{tpu_custom_call.1} parent=59 // pred_check_branch
          %371 = sbr.rel (%p369) target = $region68
        $region67: #{tpu_custom_call.1} parent=59 // pred_region
          %372 = dma.done [#allocation10], 256
        $region68: #{tpu_custom_call.1} parent=59 // pred_fallthru
          _
        %s373 = sand.u32 %s48, 1
        %s374 = scalar_lea.sflag [#allocation7], %s373
        %s375 = sand.u32 %s48, 1
        %s376 = smul.addr %s375, 16
        %s377 = scalar_lea.vmem [#allocation6], %s376
        %p378 = pneg %p61
        %p379 = pneg %p58
        %p380 = pneg %p82
        %p381 = pneg %p79
        %p382 = pneg %p103
        %p383 = pneg %p100
        %p384 = pneg %p124
        %p385 = pneg %p121
        %p386 = pneg %p145
        %p387 = pneg %p142
        %p388 = pneg %p166
        %p389 = pneg %p163
        %p390 = pneg %p187
        %p391 = pneg %p184
        %p392 = pneg %p208
        %p393 = pneg %p205
        %p394 = pneg %p229
        %p395 = pneg %p226
        %p396 = pneg %p250
        %p397 = pneg %p247
        %p398 = pneg %p276
        %p399 = pneg %p273
        %s400 = sand.u32 %s263, 1
        %s401 = scalar_lea.sflag [#allocation8], %s400
        %s402 = sand.u32 %s263, 1
        %s403 = smul.addr %s402, 32
        %s404 = scalar_lea.vmem [#allocation11], %s403
        %s405 = smul.u32 4, %s33
        %s406 = smul.u32 4, %s33
        %s408 = smul.u32 %s33, 32
        %p409 = scmp.eq.s32.totalorder %s32, 0
        %p410 = scmp.eq.s32.totalorder %s33, 0
        %p411 = pnand %p409, %p410
        %p412 = pneg %p411
        // Predicated region
        $region69: #{tpu_custom_call.1} parent=59 // pred_check
          _
        $region70: #{tpu_custom_call.1} parent=59 // pred_check_branch
          %414 = sbr.rel (%p411) target = $region72
        $region71: #{tpu_custom_call.1} parent=59 // pred_region
          %v415 = vld [vmem:[%s1] sm:$0xff]
          %v416 = vld [vmem:[%s1 + $0x8] sm:$0xff]
          %v417 = vld [vmem:[%s1 + $0x10] sm:$0xff]
          %v418 = vld [vmem:[%s1 + $0x18] sm:$0xff]
          %v419 = vld [vmem:[%s1 + $0x20] sm:$0xff]
          %v420 = vld [vmem:[%s1 + $0x28] sm:$0xff]
          %v421 = vld [vmem:[%s1 + $0x30] sm:$0xff]
          %v422 = vld [vmem:[%s1 + $0x38] sm:$0xff]
          %vm423 = vcmask 261120
          %424 = vst.msk [vmem:[#allocation2] sm:$0xff] %vm423, %v415
          %425 = vst.msk [vmem:[#allocation2 + $0x8] sm:$0xff] %vm423, %v416
          %426 = vst.msk [vmem:[#allocation2 + $0x10] sm:$0xff] %vm423, %v417
          %427 = vst.msk [vmem:[#allocation2 + $0x18] sm:$0xff] %vm423, %v418
          %428 = vst.msk [vmem:[#allocation2 + $0x20] sm:$0xff] %vm423, %v419
          %429 = vst.msk [vmem:[#allocation2 + $0x28] sm:$0xff] %vm423, %v420
          %430 = vst.msk [vmem:[#allocation2 + $0x30] sm:$0xff] %vm423, %v421
          %431 = vst.msk [vmem:[#allocation2 + $0x38] sm:$0xff] %vm423, %v422
        $region72: #{tpu_custom_call.1} parent=59 // pred_fallthru
          _
        %p432 = scmp.lt.s32.totalorder %s32, 3
        %p433 = pnand %p432, %p410
        %p434 = pneg %p433
        // Predicated region
        $region73: #{tpu_custom_call.1} parent=59 // pred_check
          _
        $region74: #{tpu_custom_call.1} parent=59 // pred_check_branch
          %436 = sbr.rel (%p433) target = $region76
        $region75: #{tpu_custom_call.1} parent=59 // pred_region
          %p437 = scmp.lt.s32.totalorder %s32, 0
          %s438 = ssub.s32 0, %s32
          %s439 = scalar_select %p437, %s438, %s32
          %s440 = sand.u32 %s439, 1
          %s441 = ssub.s32 0, %s440
          %s442 = scalar_select %p437, %s441, %s440
          %p443 = scmp.ne.s32.totalorder %s442, 0
          %p444 = scmp.lt.s32.totalorder %s442, 0
          %p445 = pnand %p444, %p443
          %p446 = pneg %p445
          %s447 = sadd.s32 %s442, 2
          %s448 = scalar_select %p446, %s447, %s442
          %p449 = scmp.eq.s32.totalorder %s448, 0
          %v450 = vld [vmem:[#allocation2] sm:$0xff]
          %v451 = vld [vmem:[#allocation2 + $0x8] sm:$0xff]
          %v452 = vld [vmem:[#allocation2 + $0x10] sm:$0xff]
          %v453 = vld [vmem:[#allocation2 + $0x18] sm:$0xff]
          %v454 = vld [vmem:[#allocation2 + $0x20] sm:$0xff]
          %v455 = vld [vmem:[#allocation2 + $0x28] sm:$0xff]
          %v456 = vld [vmem:[#allocation2 + $0x30] sm:$0xff]
          %v457 = vld [vmem:[#allocation2 + $0x38] sm:$0xff]
          %v458 = vld [vmem:[#allocation3] sm:$0xff]
          %v459 = vld [vmem:[#allocation3 + $0x8] sm:$0xff]
          %v460 = vld [vmem:[#allocation3 + $0x10] sm:$0xff]
          %v461 = vld [vmem:[#allocation3 + $0x18] sm:$0xff]
          %v462 = vld [vmem:[#allocation3 + $0x20] sm:$0xff]
          %v463 = vld [vmem:[#allocation3 + $0x28] sm:$0xff]
          %v464 = vld [vmem:[#allocation3 + $0x30] sm:$0xff]
          %v465 = vld [vmem:[#allocation3 + $0x38] sm:$0xff]
          %s466 = scalar_select %p449, 1, 0
          %v467 = vstv %s466
          %vm468 = vcmp.eq.s32.totalorder %v467, 1
          %v469 = vsel %vm468, %v450, %v458
          %v470 = vsel %vm468, %v451, %v459
          %v471 = vsel %vm468, %v452, %v460
          %v472 = vsel %vm468, %v453, %v461
          %v473 = vsel %vm468, %v454, %v462
          %v474 = vsel %vm468, %v455, %v463
          %v475 = vsel %vm468, %v456, %v464
          %v476 = vsel %vm468, %v457, %v465
          %s477 = smul.u32 %s32, 4
          %s478 = smul.addr %s477, 4
          %s479 = scalar_lea.vmem %s2, %s478
          %v480 = vld [vmem:[%s479] sm:$0xf]
          %v481 = vld [vmem:[%s479 + $0x4] sm:$0xf]
          %v482 = vld [vmem:[%s479 + $0x8] sm:$0xf]
          %v483 = vld [vmem:[%s479 + $0xc] sm:$0xf]
          %v484 = vpack.c.bf16 %v470, %v469
          %v485 = vpack.c.bf16 %v472, %v471
          %v486 = vpack.c.bf16 %v474, %v473
          %v487 = vpack.c.bf16 %v476, %v475
          %v492 = vunpack.c.l.b16 %v480
          %v493 = vunpack.c.l.b16 %v481
          %v494 = vunpack.c.l.b16 %v482
          %v495 = vunpack.c.l.b16 %v483
          %v496 = vpack.c.b16 %v493, %v492
          %v497 = vpack.c.b16 %v495, %v494
          %vm500 = vcmask 261120
          %v502 = vsel %vm500, %v484, 0
          %v505 = vsel %vm500, %v485, 0
          %v508 = vsel %vm500, %v486, 0
          %v511 = vsel %vm500, %v487, 0
          %513 = vmatprep.subr.bf16.mxu0 0
          %514 = vmatpush1.bf16.msra.mxu0 %v496
          %515 = vmatprep.subr.bf16.mxu0 0
          %516 = vmatpush1.bf16.msra.mxu0 %v497
          %517 = vmatprep.subr.bf16.mxu0 0
          %518 = vmatpush1.bf16.msra.mxu0 0
          %519 = vmatprep.subr.bf16.mxu0 0
          %520 = vmatpush1.bf16.msra.mxu0 0
          %521 = vmatprep.subr.bf16.mxu0 0
          %522 = vmatpush1.bf16.msra.mxu0 0
          %523 = vmatprep.subr.bf16.mxu0 0
          %524 = vmatpush1.bf16.msra.mxu0 0
          %525 = vmatprep.subr.bf16.mxu0 0
          %526 = vmatpush1.bf16.msra.mxu0 0
          %527 = vmatprep.subr.bf16.mxu0 0
          %528 = vmatpush1.bf16.msra.mxu0 0
          %529 = vmatprep.subr.bf16.mxu0 0
          %530 = vmatpush1.bf16.msra.mxu0 0
          %531 = vmatprep.subr.bf16.mxu0 0
          %532 = vmatpush1.bf16.msra.mxu0 0
          %533 = vmatprep.subr.bf16.mxu0 0
          %534 = vmatpush1.bf16.msra.mxu0 0
          %535 = vmatprep.subr.bf16.mxu0 0
          %536 = vmatpush1.bf16.msra.mxu0 0
          %537 = vmatprep.subr.bf16.mxu0 0
          %538 = vmatpush1.bf16.msra.mxu0 0
          %539 = vmatprep.subr.bf16.mxu0 0
          %540 = vmatpush1.bf16.msra.mxu0 0
          %541 = vmatprep.subr.bf16.mxu0 0
          %542 = vmatpush1.bf16.msra.mxu0 0
          %543 = vmatprep.subr.bf16.mxu0 0
          %544 = vmatpush1.bf16.msra.mxu0 0
          %545 = vmatprep.mubr.bf16.mxu0 0
          %546 = vmatmul.mubr.bf16.gmra.mrb[0].mxu0 %v502
          %v547 = vpop.f32.mrb[0].mxu0
          %v548 = vadd.f32 0.0, %v547
          %v549 = vpop.f32.mrb[0].mxu0
          %v550 = vpop.f32.mrb[0].mxu0
          %v551 = vadd.f32 0.0, %v550
          %v552 = vpop.f32.mrb[0].mxu0
          %553 = vmatprep.mubr.bf16.mxu0 0
          %554 = vmatmul.mubr.bf16.gmra.mrb[0].mxu0 %v505
          %v555 = vpop.f32.mrb[0].mxu0
          %v556 = vadd.f32 0.0, %v555
          %v557 = vpop.f32.mrb[0].mxu0
          %v558 = vpop.f32.mrb[0].mxu0
          %v559 = vadd.f32 0.0, %v558
          %v560 = vpop.f32.mrb[0].mxu0
          %561 = vmatprep.mubr.bf16.mxu0 0
          %562 = vmatmul.mubr.bf16.gmra.mrb[0].mxu0 %v508
          %v563 = vpop.f32.mrb[0].mxu0
          %v564 = vadd.f32 0.0, %v563
          %v565 = vpop.f32.mrb[0].mxu0
          %v566 = vpop.f32.mrb[0].mxu0
          %v567 = vadd.f32 0.0, %v566
          %v568 = vpop.f32.mrb[0].mxu0
          %569 = vmatprep.mubr.bf16.mxu0 0
          %570 = vmatmul.mubr.bf16.gmra.mrb[0].mxu0 %v511
          %v571 = vpop.f32.mrb[0].mxu0
          %v572 = vadd.f32 0.0, %v571
          %v573 = vpop.f32.mrb[0].mxu0
          %v574 = vpop.f32.mrb[0].mxu0
          %v575 = vadd.f32 0.0, %v574
          %v576 = vpop.f32.mrb[0].mxu0
          %577 = vdwg.mxu0
          %s578 = scalar_lea.vmem %s3, %s32
          %v579 = vld [vmem:[%s578] sm:$0x1]
          %v581 = vlaneseq
          %v582 = vshrl.u32 %v581, 7
          %v583 = vsub.s32 0, %v582
          %v584 = vrot.slane %v579, %v583
          %v586 = vadd.f32 %v548, %v584
          %v587 = vadd.f32 %v551, %v584
          %v588 = vadd.f32 %v556, %v584
          %v589 = vadd.f32 %v559, %v584
          %v590 = vadd.f32 %v564, %v584
          %v591 = vadd.f32 %v567, %v584
          %v592 = vadd.f32 %v572, %v584
          %v593 = vadd.f32 %v575, %v584
          %594 = vst.msk [vmem:[#allocation4] sm:$0xff] %vm500, %v586
          %595 = vst.msk [vmem:[#allocation4 + $0x8] sm:$0xff] %vm500, %v587
          %596 = vst.msk [vmem:[#allocation4 + $0x10] sm:$0xff] %vm500, %v588
          %597 = vst.msk [vmem:[#allocation4 + $0x18] sm:$0xff] %vm500, %v589
          %598 = vst.msk [vmem:[#allocation4 + $0x20] sm:$0xff] %vm500, %v590
          %599 = vst.msk [vmem:[#allocation4 + $0x28] sm:$0xff] %vm500, %v591
          %600 = vst.msk [vmem:[#allocation4 + $0x30] sm:$0xff] %vm500, %v592
          %601 = vst.msk [vmem:[#allocation4 + $0x38] sm:$0xff] %vm500, %v593
          %v602 = vpack.c.bf16 %v551, %v548
          %v603 = vpack.c.bf16 %v559, %v556
          %v604 = vpack.c.bf16 %v567, %v564
          %v605 = vpack.c.bf16 %v575, %v572
          %610 = vrot.lane.b32.xlu0 %v602, 96
          %v611 = vpop.permute.xlu0 %610
          %612 = vrot.lane.b32.xlu0 %v603, 96
          %v613 = vpop.permute.xlu0 %612
          %614 = vrot.lane.b32.xlu0 %v604, 96
          %v615 = vpop.permute.xlu0 %614
          %616 = vrot.lane.b32.xlu0 %v605, 96
          %v617 = vpop.permute.xlu0 %616
          %622 = vst.msk [vmem:[#allocation5] sm:$0xff] %vm500, %v611
          %623 = vst.msk [vmem:[#allocation5 + $0x8] sm:$0xff] %vm500, %v613
          %624 = vst.msk [vmem:[#allocation5 + $0x10] sm:$0xff] %vm500, %v615
          %625 = vst.msk [vmem:[#allocation5 + $0x18] sm:$0xff] %vm500, %v617
        $region76: #{tpu_custom_call.1} parent=59 // pred_fallthru
          _
        // Predicated region
        $region77: #{tpu_custom_call.1} parent=59 // pred_check
          %p626 = pneg %p432
        $region78: #{tpu_custom_call.1} parent=59 // pred_check_branch
          %628 = sbr.rel (%p626) target = $region80
        $region79: #{tpu_custom_call.1} parent=59 // pred_region
          %p629 = scmp.lt.s32.totalorder %s32, 0
          %s630 = ssub.s32 0, %s32
          %s631 = scalar_select %p629, %s630, %s32
          %s632 = sand.u32 %s631, 1
          %s633 = ssub.s32 0, %s632
          %s634 = scalar_select %p629, %s633, %s632
          %p635 = scmp.ne.s32.totalorder %s634, 0
          %p636 = scmp.lt.s32.totalorder %s634, 0
          %p637 = pnand %p636, %p635
          %p638 = pneg %p637
          %s639 = sadd.s32 %s634, 2
          %s640 = scalar_select %p638, %s639, %s634
          %v641 = vld [vmem:[%s364] sm:$0xf]
          %v642 = vld [vmem:[%s364 + $0x4] sm:$0xf]
          %v643 = vld [vmem:[%s364 + $0x8] sm:$0xf]
          %v644 = vld [vmem:[%s364 + $0xc] sm:$0xf]
          %v645 = vld [vmem:[#allocation5] sm:$0xff]
          %v646 = vld [vmem:[#allocation5 + $0x8] sm:$0xff]
          %v647 = vld [vmem:[#allocation5 + $0x10] sm:$0xff]
          %v648 = vld [vmem:[#allocation5 + $0x18] sm:$0xff]
          %v653 = vunpack.c.l.b16 %v641
          %v654 = vunpack.c.l.b16 %v642
          %v655 = vunpack.c.l.b16 %v643
          %v656 = vunpack.c.l.b16 %v644
          %v657 = vpack.c.b16 %v654, %v653
          %v658 = vpack.c.b16 %v656, %v655
          %vm659 = vcmask 523264
          %v661 = vsel %vm659, %v657, 0
          %v664 = vsel %vm659, %v658, 0
          %666 = vmatprep.subr.bf16.mxu0 0
          %667 = vmatpush1.bf16.msra.mxu0 %v645
          %668 = vmatprep.subr.bf16.mxu0 0
          %669 = vmatpush1.bf16.msra.mxu0 %v646
          %670 = vmatprep.subr.bf16.mxu0 0
          %671 = vmatpush1.bf16.msra.mxu0 %v647
          %672 = vmatprep.subr.bf16.mxu0 0
          %673 = vmatpush1.bf16.msra.mxu0 %v648
          %674 = vmatprep.subr.bf16.mxu0 0
          %675 = vmatpush1.bf16.msra.mxu0 0
          %676 = vmatprep.subr.bf16.mxu0 0
          %677 = vmatpush1.bf16.msra.mxu0 0
          %678 = vmatprep.subr.bf16.mxu0 0
          %679 = vmatpush1.bf16.msra.mxu0 0
          %680 = vmatprep.subr.bf16.mxu0 0
          %681 = vmatpush1.bf16.msra.mxu0 0
          %682 = vmatprep.subr.bf16.mxu0 0
          %683 = vmatpush1.bf16.msra.mxu0 0
          %684 = vmatprep.subr.bf16.mxu0 0
          %685 = vmatpush1.bf16.msra.mxu0 0
          %686 = vmatprep.subr.bf16.mxu0 0
          %687 = vmatpush1.bf16.msra.mxu0 0
          %688 = vmatprep.subr.bf16.mxu0 0
          %689 = vmatpush1.bf16.msra.mxu0 0
          %690 = vmatprep.subr.bf16.mxu0 0
          %691 = vmatpush1.bf16.msra.mxu0 0
          %692 = vmatprep.subr.bf16.mxu0 0
          %693 = vmatpush1.bf16.msra.mxu0 0
          %694 = vmatprep.subr.bf16.mxu0 0
          %695 = vmatpush1.bf16.msra.mxu0 0
          %696 = vmatprep.subr.bf16.mxu0 0
          %697 = vmatpush1.bf16.msra.mxu0 0
          %698 = vmatprep.mubr.bf16.mxu0 0
          %699 = vmatmul.mubr.bf16.gmra.mrb[0].mxu0 %v661
          %v700 = vpop.f32.mrb[0].mxu0
          %v701 = vadd.f32 0.0, %v700
          %v702 = vpop.f32.mrb[0].mxu0
          %v703 = vpop.f32.mrb[0].mxu0
          %v704 = vadd.f32 0.0, %v703
          %v705 = vpop.f32.mrb[0].mxu0
          %706 = vmatprep.mubr.bf16.mxu0 0
          %707 = vmatmul.mubr.bf16.gmra.mrb[0].mxu0 %v664
          %v708 = vpop.f32.mrb[0].mxu0
          %v709 = vadd.f32 0.0, %v708
          %v710 = vpop.f32.mrb[0].mxu0
          %v711 = vpop.f32.mrb[0].mxu0
          %v712 = vadd.f32 0.0, %v711
          %v713 = vpop.f32.mrb[0].mxu0
          %714 = vdwg.mxu0
          %s715 = scalar_lea.vmem [#allocation4], %s408
          %v716 = vld [vmem:[%s715] sm:$0xff]
          %v717 = vld [vmem:[%s715 + $0x8] sm:$0xff]
          %v718 = vld [vmem:[%s715 + $0x10] sm:$0xff]
          %v719 = vld [vmem:[%s715 + $0x18] sm:$0xff]
          %v720 = vadd.f32 %v716, %v701
          %v721 = vadd.f32 %v717, %v704
          %v722 = vadd.f32 %v718, %v709
          %v723 = vadd.f32 %v719, %v712
          %v724 = vmax.f32 %v720, 0.0
          %v725 = vmax.f32 %v721, 0.0
          %v726 = vmax.f32 %v722, 0.0
          %v727 = vmax.f32 %v723, 0.0
          %p728 = scmp.eq.s32.totalorder %s640, 0
          %s729 = scalar_lea.vmem [#allocation2], %s408
          %v730 = vld [vmem:[%s729] sm:$0xff]
          %v731 = vld [vmem:[%s729 + $0x8] sm:$0xff]
          %v732 = vld [vmem:[%s729 + $0x10] sm:$0xff]
          %v733 = vld [vmem:[%s729 + $0x18] sm:$0xff]
          %s734 = scalar_lea.vmem [#allocation3], %s408
          %v735 = vld [vmem:[%s734] sm:$0xff]
          %v736 = vld [vmem:[%s734 + $0x8] sm:$0xff]
          %v737 = vld [vmem:[%s734 + $0x10] sm:$0xff]
          %v738 = vld [vmem:[%s734 + $0x18] sm:$0xff]
          %s739 = scalar_select %p728, 1, 0
          %v740 = vstv %s739
          %vm741 = vcmp.eq.s32.totalorder %v740, 1
          %v742 = vsel %vm741, %v730, %v735
          %v743 = vsel %vm741, %v731, %v736
          %v744 = vsel %vm741, %v732, %v737
          %v745 = vsel %vm741, %v733, %v738
          %p746 = scmp.gt.s32.totalorder %s32, 0
          %v747 = vadd.f32 %v724, %v742
          %v748 = vadd.f32 %v725, %v743
          %v749 = vadd.f32 %v726, %v744
          %v750 = vadd.f32 %v727, %v745
          %s751 = scalar_select %p746, 1, 0
          %v752 = vstv %s751
          %vm753 = vcmp.eq.s32.totalorder %v752, 1
          %v754 = vsel %vm753, %v747, %v724
          %v755 = vsel %vm753, %v748, %v725
          %v756 = vsel %vm753, %v749, %v726
          %v757 = vsel %vm753, %v750, %v727
          %p758 = scmp.eq.s32.totalorder %s640, 1
          // Predicated region
          $region81: #{tpu_custom_call.1} parent=79 // pred_check
            %p759 = pneg %p758
          $region82: #{tpu_custom_call.1} parent=79 // pred_check_branch
            %761 = sbr.rel (%p759) target = $region84
          $region83: #{tpu_custom_call.1} parent=79 // pred_region
            %vm762 = vcmask 261120
            %763 = vst.msk [vmem:[%s729] sm:$0xff] %vm762, %v754
            %764 = vst.msk [vmem:[%s729 + $0x8] sm:$0xff] %vm762, %v755
            %765 = vst.msk [vmem:[%s729 + $0x10] sm:$0xff] %vm762, %v756
            %766 = vst.msk [vmem:[%s729 + $0x18] sm:$0xff] %vm762, %v757
          $region84: #{tpu_custom_call.1} parent=79 // pred_fallthru
            _
          // Predicated region
          $region85: #{tpu_custom_call.1} parent=79 // pred_check
            %p767 = pneg %p728
          $region86: #{tpu_custom_call.1} parent=79 // pred_check_branch
            %769 = sbr.rel (%p767) target = $region88
          $region87: #{tpu_custom_call.1} parent=79 // pred_region
            %vm770 = vcmask 261120
            %771 = vst.msk [vmem:[%s734] sm:$0xff] %vm770, %v754
            %772 = vst.msk [vmem:[%s734 + $0x8] sm:$0xff] %vm770, %v755
            %773 = vst.msk [vmem:[%s734 + $0x10] sm:$0xff] %vm770, %v756
            %774 = vst.msk [vmem:[%s734 + $0x18] sm:$0xff] %vm770, %v757
          $region88: #{tpu_custom_call.1} parent=79 // pred_fallthru
            _
        $region80: #{tpu_custom_call.1} parent=59 // pred_fallthru
          _
        %p775 = scmp.eq.s32.totalorder %s32, 3
        // Predicated region
        $region89: #{tpu_custom_call.1} parent=59 // pred_check
          %p776 = pneg %p775
        $region90: #{tpu_custom_call.1} parent=59 // pred_check_branch
          %778 = sbr.rel (%p776) target = $region92
        $region91: #{tpu_custom_call.1} parent=59 // pred_region
          %s779 = scalar_lea.vmem [#allocation3], %s408
          %v780 = vld [vmem:[%s779] sm:$0xff]
          %v781 = vld [vmem:[%s779 + $0x8] sm:$0xff]
          %v782 = vld [vmem:[%s779 + $0x10] sm:$0xff]
          %v783 = vld [vmem:[%s779 + $0x18] sm:$0xff]
          %v784 = vpack.c.bf16 %v781, %v780
          %v785 = vpack.c.bf16 %v783, %v782
          %v786 = vld [vmem:[#allocation9] sm:$0xf]
          %v787 = vld [vmem:[#allocation9 + $0x4] sm:$0xf]
          %v788 = vld [vmem:[#allocation9 + $0x8] sm:$0xf]
          %v789 = vld [vmem:[#allocation9 + $0xc] sm:$0xf]
          %v790 = vld [vmem:[%s5] sm:$0x1]
          %v792 = vlaneseq
          %v793 = vshrl.u32 %v792, 7
          %v794 = vsub.s32 0, %v793
          %v795 = vrot.slane %v790, %v794
          %v801 = vunpack.c.l.b16 %v786
          %v802 = vunpack.c.l.b16 %v787
          %v803 = vunpack.c.l.b16 %v788
          %v804 = vunpack.c.l.b16 %v789
          %v805 = vpack.c.b16 %v802, %v801
          %v806 = vpack.c.b16 %v804, %v803
          %vm809 = vcmask 261120
          %v811 = vsel %vm809, %v784, 0
          %v814 = vsel %vm809, %v785, 0
          %816 = vmatprep.subr.bf16.mxu0 0
          %817 = vmatpush1.bf16.msra.mxu0 %v805
          %818 = vmatprep.subr.bf16.mxu0 0
          %819 = vmatpush1.bf16.msra.mxu0 %v806
          %820 = vmatprep.subr.bf16.mxu0 0
          %821 = vmatpush1.bf16.msra.mxu0 0
          %822 = vmatprep.subr.bf16.mxu0 0
          %823 = vmatpush1.bf16.msra.mxu0 0
          %824 = vmatprep.subr.bf16.mxu0 0
          %825 = vmatpush1.bf16.msra.mxu0 0
          %826 = vmatprep.subr.bf16.mxu0 0
          %827 = vmatpush1.bf16.msra.mxu0 0
          %828 = vmatprep.subr.bf16.mxu0 0
          %829 = vmatpush1.bf16.msra.mxu0 0
          %830 = vmatprep.subr.bf16.mxu0 0
          %831 = vmatpush1.bf16.msra.mxu0 0
          %832 = vmatprep.subr.bf16.mxu0 0
          %833 = vmatpush1.bf16.msra.mxu0 0
          %834 = vmatprep.subr.bf16.mxu0 0
          %835 = vmatpush1.bf16.msra.mxu0 0
          %836 = vmatprep.subr.bf16.mxu0 0
          %837 = vmatpush1.bf16.msra.mxu0 0
          %838 = vmatprep.subr.bf16.mxu0 0
          %839 = vmatpush1.bf16.msra.mxu0 0
          %840 = vmatprep.subr.bf16.mxu0 0
          %841 = vmatpush1.bf16.msra.mxu0 0
          %842 = vmatprep.subr.bf16.mxu0 0
          %843 = vmatpush1.bf16.msra.mxu0 0
          %844 = vmatprep.subr.bf16.mxu0 0
          %845 = vmatpush1.bf16.msra.mxu0 0
          %846 = vmatprep.subr.bf16.mxu0 0
          %847 = vmatpush1.bf16.msra.mxu0 0
          %848 = vmatprep.mubr.bf16.mxu0 0
          %849 = vmatmul.mubr.bf16.gmra.mrb[0].mxu0 %v811
          %v850 = vpop.f32.mrb[0].mxu0
          %v851 = vadd.f32 %v795, %v850
          %v852 = vpop.f32.mrb[0].mxu0
          %v853 = vpop.f32.mrb[0].mxu0
          %v854 = vadd.f32 %v795, %v853
          %v855 = vpop.f32.mrb[0].mxu0
          %856 = vmatprep.mubr.bf16.mxu0 0
          %857 = vmatmul.mubr.bf16.gmra.mrb[0].mxu0 %v814
          %v858 = vpop.f32.mrb[0].mxu0
          %v859 = vadd.f32 %v795, %v858
          %v860 = vpop.f32.mrb[0].mxu0
          %v861 = vpop.f32.mrb[0].mxu0
          %v862 = vadd.f32 %v795, %v861
          %v863 = vpop.f32.mrb[0].mxu0
          %864 = vdwg.mxu0
          %v865 = vlaneseq
          %v866 = vand.u32 %v865, 127
          %vm867 = vcmp.lt.s32.totalorder %v866, 32
          %vm868 = vcmp.ge.s32.totalorder %v866, 32
          %vm869 = vcmp.lt.s32.totalorder %v866, 48
          %vm870 = vmand %vm868, %vm869
          %v871 = vsel %vm867, %v851, 0.0
          %v872 = vsel %vm867, %v854, 0.0
          %v873 = vsel %vm867, %v859, 0.0
          %v874 = vsel %vm867, %v862, 0.0
          %875 = vadd.xlane.f32.xlu0 %v871
          %v876 = vpop.xlane.xlu0 %875
          %877 = vadd.xlane.f32.xlu0 %v872
          %v878 = vpop.xlane.xlu0 %877
          %879 = vadd.xlane.f32.xlu0 %v873
          %v880 = vpop.xlane.xlu0 %879
          %881 = vadd.xlane.f32.xlu0 %v874
          %v882 = vpop.xlane.xlu0 %881
          %v883 = vmul.f32 %v876, 0.03125
          %v884 = vmul.f32 %v878, 0.03125
          %v885 = vmul.f32 %v880, 0.03125
          %v886 = vmul.f32 %v882, 0.03125
          %v887 = vsel %vm870, %v851, 0.0
          %v888 = vsel %vm870, %v854, 0.0
          %v889 = vsel %vm870, %v859, 0.0
          %v890 = vsel %vm870, %v862, 0.0
          %891 = vadd.xlane.f32.xlu0 %v887
          %v892 = vpop.xlane.xlu0 %891
          %893 = vadd.xlane.f32.xlu0 %v888
          %v894 = vpop.xlane.xlu0 %893
          %895 = vadd.xlane.f32.xlu0 %v889
          %v896 = vpop.xlane.xlu0 %895
          %897 = vadd.xlane.f32.xlu0 %v890
          %v898 = vpop.xlane.xlu0 %897
          %v899 = vmul.f32 %v892, 0.0625
          %v900 = vmul.f32 %v894, 0.0625
          %v901 = vmul.f32 %v896, 0.0625
          %v902 = vmul.f32 %v898, 0.0625
          %v903 = vsel %vm867, %v883, %v899
          %v904 = vsel %vm867, %v884, %v900
          %v905 = vsel %vm867, %v885, %v901
          %v906 = vsel %vm867, %v886, %v902
          %v907 = vsub.f32 %v851, %v903
          %v908 = vsub.f32 %v854, %v904
          %v909 = vsub.f32 %v859, %v905
          %v910 = vsub.f32 %v862, %v906
          %v911 = vmul.f32 %v907, %v907
          %v912 = vmul.f32 %v908, %v908
          %v913 = vmul.f32 %v909, %v909
          %v914 = vmul.f32 %v910, %v910
          %v915 = vsel %vm867, %v911, 0.0
          %v916 = vsel %vm867, %v912, 0.0
          %v917 = vsel %vm867, %v913, 0.0
          %v918 = vsel %vm867, %v914, 0.0
          %919 = vadd.xlane.f32.xlu0 %v915
          %v920 = vpop.xlane.xlu0 %919
          %921 = vadd.xlane.f32.xlu0 %v916
          %v922 = vpop.xlane.xlu0 %921
          %923 = vadd.xlane.f32.xlu0 %v917
          %v924 = vpop.xlane.xlu0 %923
          %925 = vadd.xlane.f32.xlu0 %v918
          %v926 = vpop.xlane.xlu0 %925
          %v927 = vmul.f32 %v920, 0.03125
          %v928 = vmul.f32 %v922, 0.03125
          %v929 = vmul.f32 %v924, 0.03125
          %v930 = vmul.f32 %v926, 0.03125
          %v931 = vsel %vm870, %v911, 0.0
          %v932 = vsel %vm870, %v912, 0.0
          %v933 = vsel %vm870, %v913, 0.0
          %v934 = vsel %vm870, %v914, 0.0
          %935 = vadd.xlane.f32.xlu0 %v931
          %v936 = vpop.xlane.xlu0 %935
          %937 = vadd.xlane.f32.xlu0 %v932
          %v938 = vpop.xlane.xlu0 %937
          %939 = vadd.xlane.f32.xlu0 %v933
          %v940 = vpop.xlane.xlu0 %939
          %941 = vadd.xlane.f32.xlu0 %v934
          %v942 = vpop.xlane.xlu0 %941
          %v943 = vmul.f32 %v936, 0.0625
          %v944 = vmul.f32 %v938, 0.0625
          %v945 = vmul.f32 %v940, 0.0625
          %v946 = vmul.f32 %v942, 0.0625
          %v947 = vadd.f32 %v927, 1e-05
          %v948 = vadd.f32 %v928, 1e-05
          %v949 = vadd.f32 %v929, 1e-05
          %v950 = vadd.f32 %v930, 1e-05
          %v951 = vrsqrt.pop %v947
          %v952 = vrsqrt.pop %v948
          %v953 = vrsqrt.pop %v949
          %v954 = vrsqrt.pop %v950
          %v955 = vadd.f32 %v943, 1e-05
          %v956 = vadd.f32 %v944, 1e-05
          %v957 = vadd.f32 %v945, 1e-05
          %v958 = vadd.f32 %v946, 1e-05
          %v959 = vrsqrt.pop %v955
          %v960 = vrsqrt.pop %v956
          %v961 = vrsqrt.pop %v957
          %v962 = vrsqrt.pop %v958
          %v963 = vsel %vm867, %v951, %v959
          %v964 = vsel %vm867, %v952, %v960
          %v965 = vsel %vm867, %v953, %v961
          %v966 = vsel %vm867, %v954, %v962
          %v967 = vmul.f32 %v907, %v963
          %v968 = vmul.f32 %v908, %v964
          %v969 = vmul.f32 %v909, %v965
          %v970 = vmul.f32 %v910, %v966
          %v971 = vld [vmem:[%s6] sm:$0x1]
          %v973 = vlaneseq
          %v974 = vshrl.u32 %v973, 7
          %v975 = vsub.s32 0, %v974
          %v976 = vrot.slane %v971, %v975
          %v978 = vmul.f32 %v967, %v976
          %v979 = vmul.f32 %v968, %v976
          %v980 = vmul.f32 %v969, %v976
          %v981 = vmul.f32 %v970, %v976
          %v982 = vld [vmem:[%s7] sm:$0x1]
          %v984 = vlaneseq
          %v985 = vshrl.u32 %v984, 7
          %v986 = vsub.s32 0, %v985
          %v987 = vrot.slane %v982, %v986
          %v989 = vadd.f32 %v978, %v987
          %v990 = vadd.f32 %v979, %v987
          %v991 = vadd.f32 %v980, %v987
          %v992 = vadd.f32 %v981, %v987
          %v993 = vmax.f32 %v989, 0.0
          %v994 = vmax.f32 %v990, 0.0
          %v995 = vmax.f32 %v991, 0.0
          %v996 = vmax.f32 %v992, 0.0
          %v997 = vpack.c.bf16 %v994, %v993
          %v998 = vpack.c.bf16 %v996, %v995
          %v999 = vld [vmem:[%s8] sm:$0xf]
          %v1000 = vld [vmem:[%s8 + $0x4] sm:$0xf]
          %v1001 = vld [vmem:[%s8 + $0x8] sm:$0xf]
          %v1002 = vld [vmem:[%s8 + $0xc] sm:$0xf]
          %v1003 = vld [vmem:[%s8 + $0x10] sm:$0xf]
          %v1004 = vld [vmem:[%s8 + $0x14] sm:$0xf]
          %v1005 = vld [vmem:[%s8 + $0x18] sm:$0xf]
          %v1006 = vld [vmem:[%s8 + $0x1c] sm:$0xf]
          %v1007 = vld [vmem:[%s8 + $0x20] sm:$0xf]
          %v1008 = vld [vmem:[%s8 + $0x24] sm:$0xf]
          %v1009 = vld [vmem:[%s8 + $0x28] sm:$0xf]
          %v1010 = vld [vmem:[%s8 + $0x2c] sm:$0xf]
          %v1011 = vld [vmem:[%s8 + $0x30] sm:$0xf]
          %v1012 = vld [vmem:[%s8 + $0x34] sm:$0xf]
          %v1013 = vld [vmem:[%s8 + $0x38] sm:$0xf]
          %v1014 = vld [vmem:[%s8 + $0x3c] sm:$0xf]
          %v1015 = vld [vmem:[%s9] sm:$0x1]
          %v1017 = vlaneseq
          %v1018 = vshrl.u32 %v1017, 7
          %v1019 = vsub.s32 0, %v1018
          %v1020 = vrot.slane %v1015, %v1019
          %v1038 = vunpack.c.l.b16 %v999
          %v1039 = vunpack.c.l.b16 %v1000
          %v1040 = vunpack.c.l.b16 %v1001
          %v1041 = vunpack.c.l.b16 %v1002
          %v1042 = vunpack.c.l.b16 %v1003
          %v1043 = vunpack.c.l.b16 %v1004
          %v1044 = vunpack.c.l.b16 %v1005
          %v1045 = vunpack.c.l.b16 %v1006
          %v1046 = vunpack.c.l.b16 %v1007
          %v1047 = vunpack.c.l.b16 %v1008
          %v1048 = vunpack.c.l.b16 %v1009
          %v1049 = vunpack.c.l.b16 %v1010
          %v1050 = vunpack.c.l.b16 %v1011
          %v1051 = vunpack.c.l.b16 %v1012
          %v1052 = vunpack.c.l.b16 %v1013
          %v1053 = vunpack.c.l.b16 %v1014
          %v1054 = vpack.c.b16 %v1039, %v1038
          %v1055 = vpack.c.b16 %v1041, %v1040
          %v1056 = vpack.c.b16 %v1043, %v1042
          %v1057 = vpack.c.b16 %v1045, %v1044
          %v1058 = vpack.c.b16 %v1047, %v1046
          %v1059 = vpack.c.b16 %v1049, %v1048
          %v1060 = vpack.c.b16 %v1051, %v1050
          %v1061 = vpack.c.b16 %v1053, %v1052
          %1070 = vmatprep.subr.bf16.mxu0 0
          %1071 = vmatpush1.bf16.msra.mxu0 %v1054
          %1072 = vmatprep.subr.bf16.mxu0 0
          %1073 = vmatpush1.bf16.msra.mxu0 %v1055
          %1074 = vmatprep.subr.bf16.mxu0 0
          %1075 = vmatpush1.bf16.msra.mxu0 %v1056
          %1076 = vmatprep.subr.bf16.mxu0 0
          %1077 = vmatpush1.bf16.msra.mxu0 %v1057
          %1078 = vmatprep.subr.bf16.mxu0 0
          %1079 = vmatpush1.bf16.msra.mxu0 %v1058
          %1080 = vmatprep.subr.bf16.mxu0 0
          %1081 = vmatpush1.bf16.msra.mxu0 %v1059
          %1082 = vmatprep.subr.bf16.mxu0 0
          %1083 = vmatpush1.bf16.msra.mxu0 %v1060
          %1084 = vmatprep.subr.bf16.mxu0 0
          %1085 = vmatpush1.bf16.msra.mxu0 %v1061
          %1086 = vmatprep.subr.bf16.mxu0 0
          %1087 = vmatpush1.bf16.msra.mxu0 0
          %1088 = vmatprep.subr.bf16.mxu0 0
          %1089 = vmatpush1.bf16.msra.mxu0 0
          %1090 = vmatprep.subr.bf16.mxu0 0
          %1091 = vmatpush1.bf16.msra.mxu0 0
          %1092 = vmatprep.subr.bf16.mxu0 0
          %1093 = vmatpush1.bf16.msra.mxu0 0
          %1094 = vmatprep.subr.bf16.mxu0 0
          %1095 = vmatpush1.bf16.msra.mxu0 0
          %1096 = vmatprep.subr.bf16.mxu0 0
          %1097 = vmatpush1.bf16.msra.mxu0 0
          %1098 = vmatprep.subr.bf16.mxu0 0
          %1099 = vmatpush1.bf16.msra.mxu0 0
          %1100 = vmatprep.subr.bf16.mxu0 0
          %1101 = vmatpush1.bf16.msra.mxu0 0
          %1102 = vmatprep.mubr.bf16.mxu0 0
          %1103 = vmatmul.mubr.bf16.gmra.mrb[0].mxu0 %v997
          %v1104 = vpop.f32.mrb[0].mxu0
          %v1105 = vadd.f32 %v1020, %v1104
          %v1106 = vpop.f32.mrb[0].mxu0
          %v1107 = vpop.f32.mrb[0].mxu0
          %v1108 = vadd.f32 %v1020, %v1107
          %v1109 = vpop.f32.mrb[0].mxu0
          %1110 = vmatprep.mubr.bf16.mxu0 0
          %1111 = vmatmul.mubr.bf16.gmra.mrb[0].mxu0 %v998
          %v1112 = vpop.f32.mrb[0].mxu0
          %v1113 = vadd.f32 %v1020, %v1112
          %v1114 = vpop.f32.mrb[0].mxu0
          %v1115 = vpop.f32.mrb[0].mxu0
          %v1116 = vadd.f32 %v1020, %v1115
          %v1117 = vpop.f32.mrb[0].mxu0
          %1118 = vdwg.mxu0
          %vm1119 = vcmp.lt.s32.totalorder %v866, 2
          %v1120 = vsel %vm1119, %v1105, 0.0
          %v1121 = vsel %vm1119, %v1108, 0.0
          %v1122 = vsel %vm1119, %v1113, 0.0
          %v1123 = vsel %vm1119, %v1116, 0.0
          %vm1124 = vcmp.eq.s32.totalorder %v866, 2
          %v1125 = vsel %vm1124, %v1105, 0.0
          %v1126 = vsel %vm1124, %v1108, 0.0
          %v1127 = vsel %vm1124, %v1113, 0.0
          %v1128 = vsel %vm1124, %v1116, 0.0
          %1129 = vadd.xlane.f32.xlu0 %v1125
          %v1130 = vpop.xlane.xlu0 %1129
          %1131 = vadd.xlane.f32.xlu0 %v1126
          %v1132 = vpop.xlane.xlu0 %1131
          %1133 = vadd.xlane.f32.xlu0 %v1127
          %v1134 = vpop.xlane.xlu0 %1133
          %1135 = vadd.xlane.f32.xlu0 %v1128
          %v1136 = vpop.xlane.xlu0 %1135
          %v1137 = vxor.u32 %v1130, 2147483648
          %v1138 = vxor.u32 %v1132, 2147483648
          %v1139 = vxor.u32 %v1134, 2147483648
          %v1140 = vxor.u32 %v1136, 2147483648
          %v1141 = vmul.f32 %v1137, 1.442695
          %v1142 = vpow.pop %v1141
          %v1143 = vmul.f32 %v1138, 1.442695
          %v1144 = vpow.pop %v1143
          %v1145 = vmul.f32 %v1139, 1.442695
          %v1146 = vpow.pop %v1145
          %v1147 = vmul.f32 %v1140, 1.442695
          %v1148 = vpow.pop %v1147
          %v1149 = vadd.f32 %v1142, 1.0
          %v1150 = vadd.f32 %v1144, 1.0
          %v1151 = vadd.f32 %v1146, 1.0
          %v1152 = vadd.f32 %v1148, 1.0
          %v1153 = vrcp.pop %v1149
          %v1154 = vmul.f32 1.0, %v1153
          %v1155 = vrcp.pop %v1150
          %v1156 = vmul.f32 1.0, %v1155
          %v1157 = vrcp.pop %v1151
          %v1158 = vmul.f32 1.0, %v1157
          %v1159 = vrcp.pop %v1152
          %v1160 = vmul.f32 1.0, %v1159
          %v1161 = vmul.f32 %v1120, %v1120
          %v1162 = vmul.f32 %v1121, %v1121
          %v1163 = vmul.f32 %v1122, %v1122
          %v1164 = vmul.f32 %v1123, %v1123
          %1165 = vadd.xlane.f32.xlu0 %v1161
          %v1166 = vpop.xlane.xlu0 %1165
          %1167 = vadd.xlane.f32.xlu0 %v1162
          %v1168 = vpop.xlane.xlu0 %1167
          %1169 = vadd.xlane.f32.xlu0 %v1163
          %v1170 = vpop.xlane.xlu0 %1169
          %1171 = vadd.xlane.f32.xlu0 %v1164
          %v1172 = vpop.xlane.xlu0 %1171
          %v1173 = vadd.f32 %v1166, 1e-12
          %v1174 = vadd.f32 %v1168, 1e-12
          %v1175 = vadd.f32 %v1170, 1e-12
          %v1176 = vadd.f32 %v1172, 1e-12
          %v1177 = vrsqrt.pop %v1173
          %v1178 = vrsqrt.pop %v1174
          %v1179 = vrsqrt.pop %v1175
          %v1180 = vrsqrt.pop %v1176
          %v1181 = vmul.f32 %v1154, %v1177
          %v1182 = vmul.f32 %v1156, %v1178
          %v1183 = vmul.f32 %v1158, %v1179
          %v1184 = vmul.f32 %v1160, %v1180
          %v1185 = vmul.f32 %v1120, %v1181
          %v1186 = vmul.f32 %v1121, %v1182
          %v1187 = vmul.f32 %v1122, %v1183
          %v1188 = vmul.f32 %v1123, %v1184
          %1189 = vst [vmem:[%s404] sm:$0xff] %v1185
          %1190 = vst [vmem:[%s404 + $0x8] sm:$0xff] %v1186
          %1191 = vst [vmem:[%s404 + $0x10] sm:$0xff] %v1187
          %1192 = vst [vmem:[%s404 + $0x18] sm:$0xff] %v1188
        $region92: #{tpu_custom_call.1} parent=59 // pred_fallthru
          _
        %s1193 = sand.u32 %s263, 1
        %s1194 = scalar_lea.sflag [#allocation8], %s1193
        %s1195 = sand.u32 %s263, 1
        %s1196 = smul.addr %s1195, 32
        %s1197 = scalar_lea.vmem [#allocation11], %s1196
        // Predicated region
        $region93: #{tpu_custom_call.1} parent=59 // pred_check
          %p1198 = pneg %p273
        $region94: #{tpu_custom_call.1} parent=59 // pred_check_branch
          %1200 = sbr.rel (%p1198) target = $region96
        $region95: #{tpu_custom_call.1} parent=59 // pred_region
          %s1201 = smul.u32 4, %s33
          %s1203 = ssub.s32 512, 512
          %1204 = vsyncadd %s1194, %s1203
          %s1205 = smul.addr %s1201, 128
          %s1206 = scalar_lea.hbm %s10, %s1205
          %s1207 = sshll.u32 %s1197, 4
          %s1208 = int_to_ptr.vmem [resolvable:$true] %s1207
          %1213 = dma.vmem_to_hbm [thread:$0]  %s1208, 512, %s1206, %s1194, 128, 128, 8
        $region96: #{tpu_custom_call.1} parent=59 // pred_fallthru
          _
      $region60: #{tpu_custom_call.1} parent=5 // pred_fallthru
        _
      %p1214 = scmp.le.s32.totalorder 2, %s23
      // Predicated region
      $region97: #{tpu_custom_call.1} parent=5 // pred_check
        %p1215 = pneg %p1214
      $region98: #{tpu_custom_call.1} parent=5 // pred_check_branch
        %1217 = sbr.rel (%p1215) target = $region100
      $region99: #{tpu_custom_call.1} parent=5 // pred_region
        %s1218 = ssub.s32 %s23, 2
        // Predicated region
        $region101: #{tpu_custom_call.1} parent=99 // pred_check
          %p1219 = pneg %p279
        $region102: #{tpu_custom_call.1} parent=99 // pred_check_branch
          %1221 = sbr.rel (%p1219) target = $region104
        $region103: #{tpu_custom_call.1} parent=99 // pred_region
          %s1222 = sand.u32 %s264, 1
          %s1223 = scalar_lea.sflag [#allocation8], %s1222
          %s1224 = sand.u32 %s264, 1
          %s1225 = smul.addr %s1224, 32
          %s1226 = scalar_lea.vmem [#allocation11], %s1225
          %1227 = dma.done %s1223, 512
        $region104: #{tpu_custom_call.1} parent=99 // pred_fallthru
          _
      $region100: #{tpu_custom_call.1} parent=5 // pred_fallthru
        _
    $region6: #{tpu_custom_call.1} parent=1 // loop_footer
      %s27 = sadd.s32 1, %s23
    $region7: #{tpu_custom_call.1} parent=1 // loop_footer_branch
      %22 = sbr.rel target = $region3
    $region8: #{tpu_custom_call.1} parent=1 // loop_exit
      _
    %1228 = vsyncpa [#allocation7], 1
    %s1229 = scalar_lea.sflag [#allocation7], 1
    %1230 = vsyncpa %s1229, 1
    %1231 = vsyncpa [#allocation10], 1
    %1232 = vsyncpa [#allocation8], 1
    %s1233 = scalar_lea.sflag [#allocation8], 1
    %1234 = vsyncpa %s1233, 1

</llo_original>
